<compile_context>
chip_gen: v7x
topology: tpu7x:2x2x1
jax: 0.10.0
libtpu: 0.0.40
codegen_flags: <defaults>
</compile_context>

<pallas_src>
import math
import functools

import jax
import jax.numpy as jnp
from jax import lax
from jax.experimental import pallas as pl
from jax.experimental.pallas import tpu as pltpu

LN_EPS = 1e-5
_SQRT1_2 = 1.0 / math.sqrt(2.0)


def _vmem_limit_bytes():
    # Generation-aware VMEM budget: ~3/4 of physical (96 MiB on v5e/v6e's
    # 128 MiB, 48 MiB on v7x's 64 MiB); conservative fallback if the query
    # is unavailable.
    default = 48 * 1024 * 1024
    try:
        cap = getattr(pltpu.get_tpu_info(), "vmem_capacity_bytes", None)
    except Exception:
        cap = None
    if not cap:
        return default
    return max(default, min(int(cap * 3 // 4), 100 * 1024 * 1024))


_VMEM_LIMIT = _vmem_limit_bytes()
_BIG_VMEM = _VMEM_LIMIT > 64 * 1024 * 1024

# Row/column tile preferences.  Larger row tiles on 128-MiB-VMEM generations
# amortize the ~0.35us/grid-step overhead and cut weight re-streaming (weights
# are re-read once per M-block since the output-column axis is innermost).
_TM_LINEAR = 1024 if _BIG_VMEM else 512
_TM_MLP = 512 if _BIG_VMEM else 256
_TH_MLP = 1024 if _BIG_VMEM else 512
_TV_HEAD = 2048


def _pick_tile(dim, pref, align):
    """Largest tile <= pref that divides dim and is a multiple of align,
    otherwise the full dim (block_shape may always equal the array dim)."""
    if dim <= pref:
        return dim
    if dim % align != 0:
        return dim
    t = (min(pref, dim) // align) * align
    while t >= align:
        if dim % t == 0:
            return t
        t -= align
    return dim


def _cparams(sem):
    return pltpu.CompilerParams(dimension_semantics=sem,
                                vmem_limit_bytes=_VMEM_LIMIT)


def _const_spec(shape, index_map):
    # Single-buffered block for operands whose block index never changes
    # across the grid (double-buffering them would only waste VMEM).
    return pl.BlockSpec(shape, index_map, pipeline_mode=pl.Buffered(1))


def _head_group(n_head, head_dim):
    """Smallest head-group size whose lane width (group*head_dim) is a
    multiple of 128, falling back to all heads (full-width block)."""
    for g in range(1, n_head + 1):
        if n_head % g == 0 and (g * head_dim) % 128 == 0:
            return g
    return n_head


def _qkv_group_perm(C, n_head, group):
    """Column permutation turning the standard c_attn output [Q|K|V] (each C
    wide, heads contiguous) into a head-grouped layout:
    [g0: Qg0|Kg0|Vg0, g1: Qg1|Kg1|Vg1, ...].  Applied to attn_w/attn_b once at
    init; pretrained c_attn weights must be permuted the same way."""
    hd = C // n_head
    n_groups = n_head // group
    cols = []
    for g in range(n_groups):
        for which in range(3):            # q, k, v of this head group
            for h in range(group):
                base = which * C + (g * group + h) * hd
                cols.extend(range(base, base + hd))
    return jnp.asarray(cols, dtype=jnp.int32)


# ----------------------------- Pallas kernels ------------------------------

def _ln_linear_kernel(x_ref, g_ref, b_ref, w_ref, bias_ref, o_ref, xn_sc):
    # Fused LayerNorm + Linear.  The LN-normalized activations are computed
    # once per row block (j == 0) and cached in VMEM; the output-column axis
    # is "arbitrary" so the cache is carried across column tiles.
    @pl.when(pl.program_id(1) == 0)
    def _():
        x = x_ref[...].astype(jnp.float32)
        mu = jnp.mean(x, axis=-1, keepdims=True)
        var = jnp.mean(jnp.square(x - mu), axis=-1, keepdims=True)
        xn = (x - mu) * lax.rsqrt(var + LN_EPS)
        xn_sc[...] = (xn * g_ref[...] + b_ref[...]).astype(jnp.bfloat16)

    acc = jnp.dot(xn_sc[...], w_ref[...], preferred_element_type=jnp.float32)
    o_ref[...] = (acc + bias_ref[...]).astype(o_ref.dtype)


def ln_linear(x2d, gamma, beta, w, bias, *, out_dtype=jnp.bfloat16,
              tm_pref=_TM_LINEAR, tn_pref=512):
    M, C = x2d.shape
    N = w.shape[1]
    tm = _pick_tile(M, tm_pref, 8)
    tn = _pick_tile(N, tn_pref, 128)
    grid = (M // tm, N // tn)
    return pl.pallas_call(
        _ln_linear_kernel,
        grid=grid,
        in_specs=[
            pl.BlockSpec((tm, C), lambda i, j: (i, 0)),          # x rows
            _const_spec((1, C), lambda i, j: (0, 0)),            # gamma
            _const_spec((1, C), lambda i, j: (0, 0)),            # beta
            pl.BlockSpec((C, tn), lambda i, j: (0, j)),          # weight tile
            pl.BlockSpec((1, tn), lambda i, j: (0, j)),          # bias tile
        ],
        out_specs=pl.BlockSpec((tm, tn), lambda i, j: (i, j)),
        out_shape=jax.ShapeDtypeStruct((M, N), out_dtype),
        scratch_shapes=[pltpu.VMEM((tm, C), jnp.bfloat16)],
        compiler_params=_cparams(("parallel", "arbitrary")),
    )(x2d, gamma.reshape(1, C), beta.reshape(1, C), w, bias.reshape(1, N))


def _attn_kernel(qkv_ref, o_ref, *, group, head_dim, scale):
    # One (batch, head-group) step: reads a (T, 3*group*hd) head-grouped QKV
    # slab (bf16), computes causal attention per head in the group, and
    # writes each head directly into the lane-dense output slab (no concat).
    qkv = qkv_ref[0]                                   # (T, 3*group*hd)
    T = qkv.shape[0]
    gw = group * head_dim
    row = lax.broadcasted_iota(jnp.int32, (T, T), 0)
    col = lax.broadcasted_iota(jnp.int32, (T, T), 1)
    causal = col <= row
    for h in range(group):
        lo, hi = h * head_dim, (h + 1) * head_dim
        q = (qkv[:, lo:hi].astype(jnp.float32) * scale).astype(jnp.bfloat16)
        k = qkv[:, gw + lo:gw + hi]
        v = qkv[:, 2 * gw + lo:2 * gw + hi]
        s = lax.dot_general(q, k, (((1,), (1,)), ((), ())),
                            preferred_element_type=jnp.float32)
        s = jnp.where(causal, s, -1e30)
        m = jnp.max(s, axis=-1, keepdims=True)
        p = jnp.exp(s - m)
        denom = jnp.sum(p, axis=-1, keepdims=True)
        p = p * pl.reciprocal(denom, approx=True)
        o_ref[0, :, lo:hi] = jnp.dot(
            p.astype(jnp.bfloat16), v,
            preferred_element_type=jnp.float32).astype(o_ref.dtype)


def causal_attention(qkv, n_head, group):
    # TODO(synk): flash-style KV-block tiling (online softmax, pl.when-skip of
    # fully masked blocks) for very long T on v7x; the full-T score per head
    # here is bounded per group and fine up to ~1k tokens.
    B, T, threeC = qkv.shape
    C = threeC // 3
    hd = C // n_head
    n_groups = n_head // group
    gw3 = 3 * group * hd
    scale = 1.0 / math.sqrt(hd)
    return pl.pallas_call(
        functools.partial(_attn_kernel, group=group, head_dim=hd, scale=scale),
        grid=(B, n_groups),
        in_specs=[pl.BlockSpec((1, T, gw3), lambda b, g: (b, 0, g))],
        out_specs=pl.BlockSpec((1, T, group * hd), lambda b, g: (b, 0, g)),
        out_shape=jax.ShapeDtypeStruct((B, T, C), jnp.bfloat16),
        compiler_params=_cparams(("parallel", "parallel")),
    )(qkv)


def _attn_proj_mlp_kernel(y_ref, pw_ref, pb_ref, x_ref, g_ref, b_ref,
                          w1_ref, b1_ref, w2_ref, b2_ref, o_ref,
                          xn_sc, acc_sc):
    # Fused: attention out-projection + residual + LN2 + c_fc + GELU + c_proj
    # + residual.  The hidden (4C) dimension is tiled over grid axis 1 with a
    # (tm, C) f32 accumulator; the post-attention residual never hits HBM.
    j = pl.program_id(1)

    @pl.when(j == 0)
    def _():
        x1 = (x_ref[...].astype(jnp.float32)
              + jnp.dot(y_ref[...], pw_ref[...],
                        preferred_element_type=jnp.float32)
              + pb_ref[...])
        mu = jnp.mean(x1, axis=-1, keepdims=True)
        var = jnp.mean(jnp.square(x1 - mu), axis=-1, keepdims=True)
        xn = (x1 - mu) * lax.rsqrt(var + LN_EPS)
        xn_sc[...] = (xn * g_ref[...] + b_ref[...]).astype(jnp.bfloat16)
        acc_sc[...] = x1 + b2_ref[...]

    h = (jnp.dot(xn_sc[...], w1_ref[...], preferred_element_type=jnp.float32)
         + b1_ref[...])
    # Exact (erf) GELU to match nn.GELU() default.
    # TODO(synk): tanh-approx GELU would move this off the VALU onto the EUP
    # (matters most on v5e) if a small activation drift is acceptable.
    h = 0.5 * h * (1.0 + lax.erf(h * _SQRT1_2))
    acc_sc[...] += jnp.dot(h.astype(jnp.bfloat16), w2_ref[...],
                           preferred_element_type=jnp.float32)

    @pl.when(j == pl.num_programs(1) - 1)
    def _():
        o_ref[...] = acc_sc[...].astype(o_ref.dtype)


def attn_proj_mlp(y2d, proj_w, proj_b, x2d, gamma, beta, w1, b1, w2, b2,
                  *, tm_pref=_TM_MLP, th_pref=_TH_MLP):
    M, C = x2d.shape
    Hdim = w1.shape[1]
    tm = _pick_tile(M, tm_pref, 8)
    th = _pick_tile(Hdim, th_pref, 128)
    grid = (M // tm, Hdim // th)
    return pl.pallas_call(
        _attn_proj_mlp_kernel,
        grid=grid,
        in_specs=[
            pl.BlockSpec((tm, C), lambda i, j: (i, 0)),          # attn out y
            _const_spec((C, C), lambda i, j: (0, 0)),            # proj_w
            _const_spec((1, C), lambda i, j: (0, 0)),            # proj_b
            pl.BlockSpec((tm, C), lambda i, j: (i, 0)),          # residual x
            _const_spec((1, C), lambda i, j: (0, 0)),            # ln2 gamma
            _const_spec((1, C), lambda i, j: (0, 0)),            # ln2 beta
            pl.BlockSpec((C, th), lambda i, j: (0, j)),          # w1 tile
            pl.BlockSpec((1, th), lambda i, j: (0, j)),          # b1 tile
            pl.BlockSpec((th, C), lambda i, j: (j, 0)),          # w2 tile
            _const_spec((1, C), lambda i, j: (0, 0)),            # b2
        ],
        out_specs=pl.BlockSpec((tm, C), lambda i, j: (i, 0)),
        out_shape=jax.ShapeDtypeStruct((M, C), x2d.dtype),
        scratch_shapes=[pltpu.VMEM((tm, C), jnp.bfloat16),       # cached LN(x1)
                        pltpu.VMEM((tm, C), jnp.float32)],       # accumulator
        compiler_params=_cparams(("parallel", "arbitrary")),
    )(y2d, proj_w, proj_b.reshape(1, C), x2d, gamma.reshape(1, C),
      beta.reshape(1, C), w1, b1.reshape(1, Hdim), w2, b2.reshape(1, C))


def _lnf_lm_head_kernel(x_ref, g_ref, b_ref, w_ref, o_ref):
    # Fused final LayerNorm + weight-tied lm_head on a vocab tile (contracts
    # on C against (tv, C) tiles of the tied embedding; no wte.T in HBM).
    x = x_ref[...].astype(jnp.float32)
    mu = jnp.mean(x, axis=-1, keepdims=True)
    var = jnp.mean(jnp.square(x - mu), axis=-1, keepdims=True)
    xn = (x - mu) * lax.rsqrt(var + LN_EPS)
    xn = (xn * g_ref[...] + b_ref[...]).astype(jnp.bfloat16)
    logits = lax.dot_general(xn, w_ref[...], (((1,), (1,)), ((), ())),
                             preferred_element_type=jnp.float32)
    o_ref[...] = logits.astype(o_ref.dtype)


def lnf_lm_head(x_pad, gamma, beta, wte, *, tv_pref=_TV_HEAD):
    Mp, C = x_pad.shape
    V = wte.shape[0]
    tv = _pick_tile(V, tv_pref, 128)
    grid = (V // tv,)
    return pl.pallas_call(
        _lnf_lm_head_kernel,
        grid=grid,
        in_specs=[
            _const_spec((Mp, C), lambda j: (0, 0)),
            _const_spec((1, C), lambda j: (0, 0)),
            _const_spec((1, C), lambda j: (0, 0)),
            pl.BlockSpec((tv, C), lambda j: (j, 0)),             # tied wte tile
        ],
        out_specs=pl.BlockSpec((Mp, tv), lambda j: (0, j)),
        out_shape=jax.ShapeDtypeStruct((Mp, V), jnp.float32),
        compiler_params=_cparams(("parallel",)),
    )(x_pad, gamma.reshape(1, C), beta.reshape(1, C), wte)


# ----------------------------- parameters ----------------------------------

def init_params(key, cfg):
    C, V, Tmax, L = cfg["n_embd"], cfg["vocab_size"], cfg["block_size"], cfg["n_layer"]
    H = cfg["n_head"]
    hd = C // H
    group = _head_group(H, hd)
    perm = _qkv_group_perm(C, H, group)
    std = 0.02
    proj_std = 0.02 / math.sqrt(2 * L)  # c_proj special init
    bf = jnp.bfloat16
    keys = jax.random.split(key, 2 + 4 * L)
    params = {
        "wte": (std * jax.random.normal(keys[0], (V, C), jnp.float32)).astype(bf),
        "wpe": (std * jax.random.normal(keys[1], (Tmax, C), jnp.float32)).astype(bf),
        "lnf_g": jnp.ones((C,), jnp.float32),
        "lnf_b": jnp.zeros((C,), jnp.float32),
        "blocks": [],
    }
    ki = 2
    for _ in range(L):
        attn_w = (std * jax.random.normal(keys[ki + 0], (C, 3 * C),
                                          jnp.float32)).astype(bf)
        attn_b = jnp.zeros((3 * C,), jnp.float32)
        blk = {
            "ln1_g": jnp.ones((C,), jnp.float32),
            "ln1_b": jnp.zeros((C,), jnp.float32),
            # c_attn columns permuted to the head-grouped QKV layout expected
            # by causal_attention (pretrained weights must be permuted too).
            "attn_w": attn_w[:, perm],
            "attn_b": attn_b[perm],
            "proj_w": (proj_std * jax.random.normal(keys[ki + 1], (C, C), jnp.float32)).astype(bf),
            "proj_b": jnp.zeros((C,), jnp.float32),
            "ln2_g": jnp.ones((C,), jnp.float32),
            "ln2_b": jnp.zeros((C,), jnp.float32),
            "fc_w": (std * jax.random.normal(keys[ki + 2], (C, 4 * C), jnp.float32)).astype(bf),
            "fc_b": jnp.zeros((4 * C,), jnp.float32),
            "mproj_w": (proj_std * jax.random.normal(keys[ki + 3], (4 * C, C), jnp.float32)).astype(bf),
            "mproj_b": jnp.zeros((C,), jnp.float32),
        }
        ki += 4
        params["blocks"].append(blk)
    return params


# ------------------------------- forward ------------------------------------

def gpt_forward(params, idx, cfg):
    # idx: (B, T) int32 token ids.  Returns logits (B, 1, vocab), matching
    # GPT.forward(idx, targets=None) in eval mode (all dropouts identity).
    B, T = idx.shape
    C, H = cfg["n_embd"], cfg["n_head"]
    hd = C // H
    group = _head_group(H, hd)

    tok_emb = jnp.take(params["wte"], idx, axis=0)            # (B,T,C) bf16 gather (glue)
    pos_emb = params["wpe"][:T]                               # (T,C) bf16
    x2d = (tok_emb.astype(jnp.float32) +
           pos_emb.astype(jnp.float32)[None]).reshape(B * T, C)   # f32 residual stream

    for blk in params["blocks"]:
        # LN1 + QKV (head-grouped columns), bf16 activations out.
        qkv = ln_linear(x2d, blk["ln1_g"], blk["ln1_b"],
                        blk["attn_w"], blk["attn_b"])          # (B*T, 3C) bf16
        # Causal attention per (batch, head-group).
        y = causal_attention(qkv.reshape(B, T, 3 * C), H, group)   # (B,T,C) bf16
        # proj + residual + LN2 + MLP + residual, hidden-dim tiled.
        x2d = attn_proj_mlp(y.reshape(B * T, C),
                            blk["proj_w"], blk["proj_b"], x2d,
                            blk["ln2_g"], blk["ln2_b"],
                            blk["fc_w"], blk["fc_b"],
                            blk["mproj_w"], blk["mproj_b"])    # (B*T, C) f32

    # targets=None path: LN_f + lm_head on the last position only (LN is
    # per-position, so this matches ln_f(x)[:, -1]).  Pad B up to 8 sublanes.
    x_last = x2d.reshape(B, T, C)[:, -1, :]                    # (B, C)
    Mp = max(8, ((B + 7) // 8) * 8)
    x_pad = jnp.zeros((Mp, C), jnp.float32).at[:B].set(x_last)
    logits = lnf_lm_head(x_pad, params["lnf_g"], params["lnf_b"],
                         params["wte"])[:B]                    # weight-tied lm_head
    return logits[:, None, :]                                  # (B, 1, vocab)

# TODO(synk): training-mode paths (ConcreteDropout sampling/regularization,
# attention dropout, cross-entropy/bpc loss for targets!=None) are not
# implemented; this reproduces the eval/inference forward pass only.


if __name__ == "__main__":
    cfg = dict(
        vocab_size=256,
        block_size=64,
        n_layer=2,
        n_head=4,
        n_embd=64,
        bias=True,
        dropout=0.0,
    )
    key = jax.random.PRNGKey(0)
    pkey, ikey = jax.random.split(key)
    params = init_params(pkey, cfg)

    B, T = 2, 16
    idx = jax.random.randint(ikey, (B, T), 0, cfg["vocab_size"], dtype=jnp.int32)

    fwd = jax.jit(functools.partial(gpt_forward, cfg=cfg))
    logits = fwd(params, idx)
    jax.block_until_ready(logits)
    assert logits.shape == (B, 1, cfg["vocab_size"])
    assert bool(jnp.all(jnp.isfinite(logits)))
    print("KERNEL_OK")
</pallas_src>

<mosaic_0001>
module attributes {stable_mosaic.version = 11 : i64} {
  func.func @_ln_linear_kernel(%arg0: i32, %arg1: i32, %arg2: memref<32x64xf32, #tpu.memory_space<vmem>>, %arg3: memref<1x64xf32, #tpu.memory_space<vmem>>, %arg4: memref<1x64xf32, #tpu.memory_space<vmem>>, %arg5: memref<64x192xbf16, #tpu.memory_space<vmem>>, %arg6: memref<1x192xf32, #tpu.memory_space<vmem>>, %arg7: memref<32x192xbf16, #tpu.memory_space<vmem>>, %arg8: memref<32x64xbf16, #tpu.memory_space<vmem>>) attributes {dimension_semantics = [#tpu.dimension_semantics<parallel>, #tpu.dimension_semantics<arbitrary>], iteration_bounds = array<i64: 1, 1>, scalar_prefetch = 0 : i64, scratch_operands = 1 : i64, tpu.core_type = #tpu.core_type<tc>, window_params = [{transform_indices = @transform_0, window_bounds = array<i64: 32, 64>}, {pipeline_mode = #tpu.pipeline_mode<synchronous>, transform_indices = @transform_1, window_bounds = array<i64: 1, 64>}, {pipeline_mode = #tpu.pipeline_mode<synchronous>, transform_indices = @transform_2, window_bounds = array<i64: 1, 64>}, {transform_indices = @transform_3, window_bounds = array<i64: 64, 192>}, {transform_indices = @transform_4, window_bounds = array<i64: 1, 192>}, {transform_indices = @transform_5, window_bounds = array<i64: 32, 192>}]} {
    %c0_i32 = arith.constant 0 : i32
    %0 = arith.cmpi eq, %arg1, %c0_i32 : i32
    %1 = arith.extui %0 : i1 to i32
    %c0_i32_0 = arith.constant 0 : i32
    %2 = arith.cmpi ne, %1, %c0_i32_0 : i32
    scf.if %2 {
      %c0_8 = arith.constant 0 : index
      %c0_9 = arith.constant 0 : index
      %11 = vector.load %arg2[%c0_8, %c0_9] : memref<32x64xf32, #tpu.memory_space<vmem>>, vector<32x64xf32>
      %cst_10 = arith.constant dense<0.000000e+00> : vector<32xf32>
      %12 = vector.multi_reduction <add>, %11, %cst_10 [1] : vector<32x64xf32> to vector<32xf32>
      %13 = vector.shape_cast %12 : vector<32xf32> to vector<32x1xf32>
      %cst_11 = arith.constant 6.400000e+01 : f32
      %14 = vector.broadcast %cst_11 : f32 to vector<32x1xf32>
      %15 = arith.divf %13, %14 : vector<32x1xf32>
      %16 = vector.broadcast %15 : vector<32x1xf32> to vector<32x64xf32>
      %17 = arith.subf %11, %16 : vector<32x64xf32>
      %18 = arith.mulf %17, %17 : vector<32x64xf32>
      %cst_12 = arith.constant dense<0.000000e+00> : vector<32xf32>
      %19 = vector.multi_reduction <add>, %18, %cst_12 [1] : vector<32x64xf32> to vector<32xf32>
      %20 = vector.shape_cast %19 : vector<32xf32> to vector<32x1xf32>
      %cst_13 = arith.constant 6.400000e+01 : f32
      %21 = vector.broadcast %cst_13 : f32 to vector<32x1xf32>
      %22 = arith.divf %20, %21 : vector<32x1xf32>
      %23 = vector.broadcast %15 : vector<32x1xf32> to vector<32x64xf32>
      %24 = arith.subf %11, %23 : vector<32x64xf32>
      %cst_14 = arith.constant 9.99999974E-6 : f32
      %25 = vector.broadcast %cst_14 : f32 to vector<32x1xf32>
      %26 = arith.addf %22, %25 : vector<32x1xf32>
      %27 = math.rsqrt %26 : vector<32x1xf32>
      %28 = vector.broadcast %27 : vector<32x1xf32> to vector<32x64xf32>
      %29 = arith.mulf %24, %28 : vector<32x64xf32>
      %c0_15 = arith.constant 0 : index
      %c0_16 = arith.constant 0 : index
      %30 = vector.load %arg3[%c0_15, %c0_16] : memref<1x64xf32, #tpu.memory_space<vmem>>, vector<1x64xf32>
      %31 = vector.broadcast %30 : vector<1x64xf32> to vector<32x64xf32>
      %32 = arith.mulf %29, %31 : vector<32x64xf32>
      %c0_17 = arith.constant 0 : index
      %c0_18 = arith.constant 0 : index
      %33 = vector.load %arg4[%c0_17, %c0_18] : memref<1x64xf32, #tpu.memory_space<vmem>>, vector<1x64xf32>
      %34 = vector.broadcast %33 : vector<1x64xf32> to vector<32x64xf32>
      %35 = arith.addf %32, %34 : vector<32x64xf32>
      %36 = arith.truncf %35 : vector<32x64xf32> to vector<32x64xbf16>
      %c0_19 = arith.constant 0 : index
      %c0_20 = arith.constant 0 : index
      %37 = vector.load %arg8[%c0_19, %c0_20] : memref<32x64xbf16, #tpu.memory_space<vmem>>, vector<32x64xbf16>
      tpu.vector_store %arg8[%c0_19, %c0_20], %36 {strides = array<i32>} : memref<32x64xbf16, #tpu.memory_space<vmem>>, vector<32x64xbf16>,
    } else {
    }
    %c0 = arith.constant 0 : index
    %c0_1 = arith.constant 0 : index
    %3 = vector.load %arg8[%c0, %c0_1] : memref<32x64xbf16, #tpu.memory_space<vmem>>, vector<32x64xbf16>
    %c0_2 = arith.constant 0 : index
    %c0_3 = arith.constant 0 : index
    %4 = vector.load %arg5[%c0_2, %c0_3] : memref<64x192xbf16, #tpu.memory_space<vmem>>, vector<64x192xbf16>
    %cst = arith.constant dense<0.000000e+00> : vector<32x192xf32>
    %5 = tpu.matmul %3, %4, %cst {dimension_numbers = #tpu.dot_dimension_numbers<[1], [0], [0], [1], [0, 0, 1, 1], [], []>} : vector<32x64xbf16>, vector<64x192xbf16>, vector<32x192xf32> -> vector<32x192xf32>
    %c0_4 = arith.constant 0 : index
    %c0_5 = arith.constant 0 : index
    %6 = vector.load %arg6[%c0_4, %c0_5] : memref<1x192xf32, #tpu.memory_space<vmem>>, vector<1x192xf32>
    %7 = vector.broadcast %6 : vector<1x192xf32> to vector<32x192xf32>
    %8 = arith.addf %5, %7 : vector<32x192xf32>
    %9 = arith.truncf %8 : vector<32x192xf32> to vector<32x192xbf16>
    %c0_6 = arith.constant 0 : index
    %c0_7 = arith.constant 0 : index
    %10 = vector.load %arg7[%c0_6, %c0_7] : memref<32x192xbf16, #tpu.memory_space<vmem>>, vector<32x192xbf16>
    tpu.vector_store %arg7[%c0_6, %c0_7], %9 {strides = array<i32>} : memref<32x192xbf16, #tpu.memory_space<vmem>>, vector<32x192xbf16>,
    return
  }
  func.func @transform_0(%arg0: i32, %arg1: i32) -> (i32, i32) {
    %c0_i32 = arith.constant 0 : i32
    %c0_i32_0 = arith.constant 0 : i32
    return %arg0, %c0_i32 : i32, i32
  }
  func.func @transform_1(%arg0: i32, %arg1: i32) -> (i32, i32) {
    %c0_i32 = arith.constant 0 : i32
    %c0_i32_0 = arith.constant 0 : i32
    %c0_i32_1 = arith.constant 0 : i32
    return %c0_i32, %c0_i32_0 : i32, i32
  }
  func.func @transform_2(%arg0: i32, %arg1: i32) -> (i32, i32) {
    %c0_i32 = arith.constant 0 : i32
    %c0_i32_0 = arith.constant 0 : i32
    %c0_i32_1 = arith.constant 0 : i32
    return %c0_i32, %c0_i32_0 : i32, i32
  }
  func.func @transform_3(%arg0: i32, %arg1: i32) -> (i32, i32) {
    %c0_i32 = arith.constant 0 : i32
    %c0_i32_0 = arith.constant 0 : i32
    return %c0_i32, %arg1 : i32, i32
  }
  func.func @transform_4(%arg0: i32, %arg1: i32) -> (i32, i32) {
    %c0_i32 = arith.constant 0 : i32
    %c0_i32_0 = arith.constant 0 : i32
    return %c0_i32, %arg1 : i32, i32
  }
  func.func @transform_5(%arg0: i32, %arg1: i32) -> (i32, i32) {
    %c0_i32 = arith.constant 0 : i32
    return %arg0, %arg1 : i32, i32
  }
}

module attributes {stable_mosaic.version = 11 : i64} {
  func.func @_attn_kernel(%arg0: i32, %arg1: i32, %arg2: memref<1x16x192xbf16, #tpu.memory_space<vmem>>, %arg3: memref<1x16x64xbf16, #tpu.memory_space<vmem>>) attributes {dimension_semantics = [#tpu.dimension_semantics<parallel>, #tpu.dimension_semantics<parallel>], iteration_bounds = array<i64: 2, 1>, scalar_prefetch = 0 : i64, scratch_operands = 0 : i64, tpu.core_type = #tpu.core_type<tc>, window_params = [{transform_indices = @transform_0, window_bounds = array<i64: 1, 16, 192>}, {transform_indices = @transform_1, window_bounds = array<i64: 1, 16, 64>}]} {
    %c0 = arith.constant 0 : index
    %c0_0 = arith.constant 0 : index
    %c0_1 = arith.constant 0 : index
    %0 = vector.load %arg2[%c0, %c0_0, %c0_1] : memref<1x16x192xbf16, #tpu.memory_space<vmem>>, vector<1x16x192xbf16>
    %1 = vector.shape_cast %0 : vector<1x16x192xbf16> to vector<16x192xbf16>
    %2 = tpu.iota {dimensions = array<i32: 0>} : vector<16x16xi32>
    %3 = tpu.iota {dimensions = array<i32: 1>} : vector<16x16xi32>
    %4 = arith.cmpi sle, %3, %2 : vector<16x16xi32>
    %5 = vector.extract_strided_slice %1 {offsets = [0, 0], sizes = [16, 16], strides = [1, 1]} : vector<16x192xbf16> to vector<16x16xbf16>
    %6 = arith.extf %5 : vector<16x16xbf16> to vector<16x16xf32>
    %cst = arith.constant 2.500000e-01 : f32
    %7 = vector.broadcast %cst : f32 to vector<16x16xf32>
    %8 = arith.mulf %6, %7 : vector<16x16xf32>
    %9 = arith.truncf %8 : vector<16x16xf32> to vector<16x16xbf16>
    %10 = vector.extract_strided_slice %1 {offsets = [0, 64], sizes = [16, 16], strides = [1, 1]} : vector<16x192xbf16> to vector<16x16xbf16>
    %11 = vector.extract_strided_slice %1 {offsets = [0, 128], sizes = [16, 16], strides = [1, 1]} : vector<16x192xbf16> to vector<16x16xbf16>
    %cst_2 = arith.constant dense<0.000000e+00> : vector<16x16xf32>
    %12 = tpu.matmul %9, %10, %cst_2 {dimension_numbers = #tpu.dot_dimension_numbers<[1], [1], [0], [0], [0, 0, 1, 0], [], []>} : vector<16x16xbf16>, vector<16x16xbf16>, vector<16x16xf32> -> vector<16x16xf32>
    %cst_3 = arith.constant -1.000000e+30 : f32
    %13 = vector.broadcast %cst_3 : f32 to vector<16x16xf32>
    %14 = arith.select %4, %12, %13 : vector<16x16xi1>, vector<16x16xf32>
    %cst_4 = arith.constant dense<0xFF800000> : vector<16xf32>
    %15 = vector.multi_reduction <maximumf>, %14, %cst_4 [1] : vector<16x16xf32> to vector<16xf32>
    %16 = vector.shape_cast %15 : vector<16xf32> to vector<16x1xf32>
    %17 = vector.broadcast %16 : vector<16x1xf32> to vector<16x16xf32>
    %18 = arith.subf %14, %17 : vector<16x16xf32>
    %19 = math.exp %18 : vector<16x16xf32>
    %cst_5 = arith.constant dense<0.000000e+00> : vector<16xf32>
    %20 = vector.multi_reduction <add>, %19, %cst_5 [1] : vector<16x16xf32> to vector<16xf32>
    %21 = vector.shape_cast %20 : vector<16xf32> to vector<16x1xf32>
    %22 = tpu.reciprocal %21 {approx = true} : vector<16x1xf32> -> vector<16x1xf32>
    %23 = vector.broadcast %22 : vector<16x1xf32> to vector<16x16xf32>
    %24 = arith.mulf %19, %23 : vector<16x16xf32>
    %25 = arith.truncf %24 : vector<16x16xf32> to vector<16x16xbf16>
    %cst_6 = arith.constant dense<0.000000e+00> : vector<16x16xf32>
    %26 = tpu.matmul %25, %11, %cst_6 {dimension_numbers = #tpu.dot_dimension_numbers<[1], [0], [0], [1], [0, 0, 1, 1], [], []>} : vector<16x16xbf16>, vector<16x16xbf16>, vector<16x16xf32> -> vector<16x16xf32>
    %27 = arith.truncf %26 : vector<16x16xf32> to vector<16x16xbf16>
    %c0_7 = arith.constant 0 : index
    %c0_8 = arith.constant 0 : index
    %c0_9 = arith.constant 0 : index
    %28 = vector.load %arg3[%c0_7, %c0_8, %c0_9] : memref<1x16x64xbf16, #tpu.memory_space<vmem>>, vector<1x16x16xbf16>
    %29 = vector.shape_cast %28 : vector<1x16x16xbf16> to vector<16x16xbf16>
    %30 = vector.shape_cast %27 : vector<16x16xbf16> to vector<1x16x16xbf16>
    tpu.vector_store %arg3[%c0_7, %c0_8, %c0_9], %30 {strides = array<i32>} : memref<1x16x64xbf16, #tpu.memory_space<vmem>>, vector<1x16x16xbf16>,
    %31 = vector.extract_strided_slice %1 {offsets = [0, 16], sizes = [16, 16], strides = [1, 1]} : vector<16x192xbf16> to vector<16x16xbf16>
    %32 = arith.extf %31 : vector<16x16xbf16> to vector<16x16xf32>
    %cst_10 = arith.constant 2.500000e-01 : f32
    %33 = vector.broadcast %cst_10 : f32 to vector<16x16xf32>
    %34 = arith.mulf %32, %33 : vector<16x16xf32>
    %35 = arith.truncf %34 : vector<16x16xf32> to vector<16x16xbf16>
    %36 = vector.extract_strided_slice %1 {offsets = [0, 80], sizes = [16, 16], strides = [1, 1]} : vector<16x192xbf16> to vector<16x16xbf16>
    %37 = vector.extract_strided_slice %1 {offsets = [0, 144], sizes = [16, 16], strides = [1, 1]} : vector<16x192xbf16> to vector<16x16xbf16>
    %cst_11 = arith.constant dense<0.000000e+00> : vector<16x16xf32>
    %38 = tpu.matmul %35, %36, %cst_11 {dimension_numbers = #tpu.dot_dimension_numbers<[1], [1], [0], [0], [0, 0, 1, 0], [], []>} : vector<16x16xbf16>, vector<16x16xbf16>, vector<16x16xf32> -> vector<16x16xf32>
    %cst_12 = arith.constant -1.000000e+30 : f32
    %39 = vector.broadcast %cst_12 : f32 to vector<16x16xf32>
    %40 = arith.select %4, %38, %39 : vector<16x16xi1>, vector<16x16xf32>
    %cst_13 = arith.constant dense<0xFF800000> : vector<16xf32>
    %41 = vector.multi_reduction <maximumf>, %40, %cst_13 [1] : vector<16x16xf32> to vector<16xf32>
    %42 = vector.shape_cast %41 : vector<16xf32> to vector<16x1xf32>
    %43 = vector.broadcast %42 : vector<16x1xf32> to vector<16x16xf32>
    %44 = arith.subf %40, %43 : vector<16x16xf32>
    %45 = math.exp %44 : vector<16x16xf32>
    %cst_14 = arith.constant dense<0.000000e+00> : vector<16xf32>
    %46 = vector.multi_reduction <add>, %45, %cst_14 [1] : vector<16x16xf32> to vector<16xf32>
    %47 = vector.shape_cast %46 : vector<16xf32> to vector<16x1xf32>
    %48 = tpu.reciprocal %47 {approx = true} : vector<16x1xf32> -> vector<16x1xf32>
    %49 = vector.broadcast %48 : vector<16x1xf32> to vector<16x16xf32>
    %50 = arith.mulf %45, %49 : vector<16x16xf32>
    %51 = arith.truncf %50 : vector<16x16xf32> to vector<16x16xbf16>
    %cst_15 = arith.constant dense<0.000000e+00> : vector<16x16xf32>
    %52 = tpu.matmul %51, %37, %cst_15 {dimension_numbers = #tpu.dot_dimension_numbers<[1], [0], [0], [1], [0, 0, 1, 1], [], []>} : vector<16x16xbf16>, vector<16x16xbf16>, vector<16x16xf32> -> vector<16x16xf32>
    %53 = arith.truncf %52 : vector<16x16xf32> to vector<16x16xbf16>
    %c0_16 = arith.constant 0 : index
    %c0_17 = arith.constant 0 : index
    %c16 = arith.constant 16 : index
    %54 = vector.load %arg3[%c0_16, %c0_17, %c16] : memref<1x16x64xbf16, #tpu.memory_space<vmem>>, vector<1x16x16xbf16>
    %55 = vector.shape_cast %54 : vector<1x16x16xbf16> to vector<16x16xbf16>
    %56 = vector.shape_cast %53 : vector<16x16xbf16> to vector<1x16x16xbf16>
    tpu.vector_store %arg3[%c0_16, %c0_17, %c16], %56 {strides = array<i32>} : memref<1x16x64xbf16, #tpu.memory_space<vmem>>, vector<1x16x16xbf16>,
    %57 = vector.extract_strided_slice %1 {offsets = [0, 32], sizes = [16, 16], strides = [1, 1]} : vector<16x192xbf16> to vector<16x16xbf16>
    %58 = arith.extf %57 : vector<16x16xbf16> to vector<16x16xf32>
    %cst_18 = arith.constant 2.500000e-01 : f32
    %59 = vector.broadcast %cst_18 : f32 to vector<16x16xf32>
    %60 = arith.mulf %58, %59 : vector<16x16xf32>
    %61 = arith.truncf %60 : vector<16x16xf32> to vector<16x16xbf16>
    %62 = vector.extract_strided_slice %1 {offsets = [0, 96], sizes = [16, 16], strides = [1, 1]} : vector<16x192xbf16> to vector<16x16xbf16>
    %63 = vector.extract_strided_slice %1 {offsets = [0, 160], sizes = [16, 16], strides = [1, 1]} : vector<16x192xbf16> to vector<16x16xbf16>
    %cst_19 = arith.constant dense<0.000000e+00> : vector<16x16xf32>
    %64 = tpu.matmul %61, %62, %cst_19 {dimension_numbers = #tpu.dot_dimension_numbers<[1], [1], [0], [0], [0, 0, 1, 0], [], []>} : vector<16x16xbf16>, vector<16x16xbf16>, vector<16x16xf32> -> vector<16x16xf32>
    %cst_20 = arith.constant -1.000000e+30 : f32
    %65 = vector.broadcast %cst_20 : f32 to vector<16x16xf32>
    %66 = arith.select %4, %64, %65 : vector<16x16xi1>, vector<16x16xf32>
    %cst_21 = arith.constant dense<0xFF800000> : vector<16xf32>
    %67 = vector.multi_reduction <maximumf>, %66, %cst_21 [1] : vector<16x16xf32> to vector<16xf32>
    %68 = vector.shape_cast %67 : vector<16xf32> to vector<16x1xf32>
    %69 = vector.broadcast %68 : vector<16x1xf32> to vector<16x16xf32>
    %70 = arith.subf %66, %69 : vector<16x16xf32>
    %71 = math.exp %70 : vector<16x16xf32>
    %cst_22 = arith.constant dense<0.000000e+00> : vector<16xf32>
    %72 = vector.multi_reduction <add>, %71, %cst_22 [1] : vector<16x16xf32> to vector<16xf32>
    %73 = vector.shape_cast %72 : vector<16xf32> to vector<16x1xf32>
    %74 = tpu.reciprocal %73 {approx = true} : vector<16x1xf32> -> vector<16x1xf32>
    %75 = vector.broadcast %74 : vector<16x1xf32> to vector<16x16xf32>
    %76 = arith.mulf %71, %75 : vector<16x16xf32>
    %77 = arith.truncf %76 : vector<16x16xf32> to vector<16x16xbf16>
    %cst_23 = arith.constant dense<0.000000e+00> : vector<16x16xf32>
    %78 = tpu.matmul %77, %63, %cst_23 {dimension_numbers = #tpu.dot_dimension_numbers<[1], [0], [0], [1], [0, 0, 1, 1], [], []>} : vector<16x16xbf16>, vector<16x16xbf16>, vector<16x16xf32> -> vector<16x16xf32>
    %79 = arith.truncf %78 : vector<16x16xf32> to vector<16x16xbf16>
    %c0_24 = arith.constant 0 : index
    %c0_25 = arith.constant 0 : index
    %c32 = arith.constant 32 : index
    %80 = vector.load %arg3[%c0_24, %c0_25, %c32] : memref<1x16x64xbf16, #tpu.memory_space<vmem>>, vector<1x16x16xbf16>
    %81 = vector.shape_cast %80 : vector<1x16x16xbf16> to vector<16x16xbf16>
    %82 = vector.shape_cast %79 : vector<16x16xbf16> to vector<1x16x16xbf16>
    tpu.vector_store %arg3[%c0_24, %c0_25, %c32], %82 {strides = array<i32>} : memref<1x16x64xbf16, #tpu.memory_space<vmem>>, vector<1x16x16xbf16>,
    %83 = vector.extract_strided_slice %1 {offsets = [0, 48], sizes = [16, 16], strides = [1, 1]} : vector<16x192xbf16> to vector<16x16xbf16>
    %84 = arith.extf %83 : vector<16x16xbf16> to vector<16x16xf32>
    %cst_26 = arith.constant 2.500000e-01 : f32
    %85 = vector.broadcast %cst_26 : f32 to vector<16x16xf32>
    %86 = arith.mulf %84, %85 : vector<16x16xf32>
    %87 = arith.truncf %86 : vector<16x16xf32> to vector<16x16xbf16>
    %88 = vector.extract_strided_slice %1 {offsets = [0, 112], sizes = [16, 16], strides = [1, 1]} : vector<16x192xbf16> to vector<16x16xbf16>
    %89 = vector.extract_strided_slice %1 {offsets = [0, 176], sizes = [16, 16], strides = [1, 1]} : vector<16x192xbf16> to vector<16x16xbf16>
    %cst_27 = arith.constant dense<0.000000e+00> : vector<16x16xf32>
    %90 = tpu.matmul %87, %88, %cst_27 {dimension_numbers = #tpu.dot_dimension_numbers<[1], [1], [0], [0], [0, 0, 1, 0], [], []>} : vector<16x16xbf16>, vector<16x16xbf16>, vector<16x16xf32> -> vector<16x16xf32>
    %cst_28 = arith.constant -1.000000e+30 : f32
    %91 = vector.broadcast %cst_28 : f32 to vector<16x16xf32>
    %92 = arith.select %4, %90, %91 : vector<16x16xi1>, vector<16x16xf32>
    %cst_29 = arith.constant dense<0xFF800000> : vector<16xf32>
    %93 = vector.multi_reduction <maximumf>, %92, %cst_29 [1] : vector<16x16xf32> to vector<16xf32>
    %94 = vector.shape_cast %93 : vector<16xf32> to vector<16x1xf32>
    %95 = vector.broadcast %94 : vector<16x1xf32> to vector<16x16xf32>
    %96 = arith.subf %92, %95 : vector<16x16xf32>
    %97 = math.exp %96 : vector<16x16xf32>
    %cst_30 = arith.constant dense<0.000000e+00> : vector<16xf32>
    %98 = vector.multi_reduction <add>, %97, %cst_30 [1] : vector<16x16xf32> to vector<16xf32>
    %99 = vector.shape_cast %98 : vector<16xf32> to vector<16x1xf32>
    %100 = tpu.reciprocal %99 {approx = true} : vector<16x1xf32> -> vector<16x1xf32>
    %101 = vector.broadcast %100 : vector<16x1xf32> to vector<16x16xf32>
    %102 = arith.mulf %97, %101 : vector<16x16xf32>
    %103 = arith.truncf %102 : vector<16x16xf32> to vector<16x16xbf16>
    %cst_31 = arith.constant dense<0.000000e+00> : vector<16x16xf32>
    %104 = tpu.matmul %103, %89, %cst_31 {dimension_numbers = #tpu.dot_dimension_numbers<[1], [0], [0], [1], [0, 0, 1, 1], [], []>} : vector<16x16xbf16>, vector<16x16xbf16>, vector<16x16xf32> -> vector<16x16xf32>
    %105 = arith.truncf %104 : vector<16x16xf32> to vector<16x16xbf16>
    %c0_32 = arith.constant 0 : index
    %c0_33 = arith.constant 0 : index
    %c48 = arith.constant 48 : index
    %106 = vector.load %arg3[%c0_32, %c0_33, %c48] : memref<1x16x64xbf16, #tpu.memory_space<vmem>>, vector<1x16x16xbf16>
    %107 = vector.shape_cast %106 : vector<1x16x16xbf16> to vector<16x16xbf16>
    %108 = vector.shape_cast %105 : vector<16x16xbf16> to vector<1x16x16xbf16>
    tpu.vector_store %arg3[%c0_32, %c0_33, %c48], %108 {strides = array<i32>} : memref<1x16x64xbf16, #tpu.memory_space<vmem>>, vector<1x16x16xbf16>,
    return
  }
  func.func @transform_0(%arg0: i32, %arg1: i32) -> (i32, i32, i32) {
    %c0_i32 = arith.constant 0 : i32
    %c0_i32_0 = arith.constant 0 : i32
    return %arg0, %c0_i32, %arg1 : i32, i32, i32
  }
  func.func @transform_1(%arg0: i32, %arg1: i32) -> (i32, i32, i32) {
    %c0_i32 = arith.constant 0 : i32
    %c0_i32_0 = arith.constant 0 : i32
    return %arg0, %c0_i32, %arg1 : i32, i32, i32
  }
}

module attributes {stable_mosaic.version = 11 : i64} {
  func.func @_attn_proj_mlp_kernel(%arg0: i32, %arg1: i32, %arg2: memref<32x64xbf16, #tpu.memory_space<vmem>>, %arg3: memref<64x64xbf16, #tpu.memory_space<vmem>>, %arg4: memref<1x64xf32, #tpu.memory_space<vmem>>, %arg5: memref<32x64xf32, #tpu.memory_space<vmem>>, %arg6: memref<1x64xf32, #tpu.memory_space<vmem>>, %arg7: memref<1x64xf32, #tpu.memory_space<vmem>>, %arg8: memref<64x256xbf16, #tpu.memory_space<vmem>>, %arg9: memref<1x256xf32, #tpu.memory_space<vmem>>, %arg10: memref<256x64xbf16, #tpu.memory_space<vmem>>, %arg11: memref<1x64xf32, #tpu.memory_space<vmem>>, %arg12: memref<32x64xf32, #tpu.memory_space<vmem>>, %arg13: memref<32x64xbf16, #tpu.memory_space<vmem>>, %arg14: memref<32x64xf32, #tpu.memory_space<vmem>>) attributes {dimension_semantics = [#tpu.dimension_semantics<parallel>, #tpu.dimension_semantics<arbitrary>], iteration_bounds = array<i64: 1, 1>, scalar_prefetch = 0 : i64, scratch_operands = 2 : i64, tpu.core_type = #tpu.core_type<tc>, window_params = [{transform_indices = @transform_0, window_bounds = array<i64: 32, 64>}, {pipeline_mode = #tpu.pipeline_mode<synchronous>, transform_indices = @transform_1, window_bounds = array<i64: 64, 64>}, {pipeline_mode = #tpu.pipeline_mode<synchronous>, transform_indices = @transform_2, window_bounds = array<i64: 1, 64>}, {transform_indices = @transform_3, window_bounds = array<i64: 32, 64>}, {pipeline_mode = #tpu.pipeline_mode<synchronous>, transform_indices = @transform_4, window_bounds = array<i64: 1, 64>}, {pipeline_mode = #tpu.pipeline_mode<synchronous>, transform_indices = @transform_5, window_bounds = array<i64: 1, 64>}, {transform_indices = @transform_6, window_bounds = array<i64: 64, 256>}, {transform_indices = @transform_7, window_bounds = array<i64: 1, 256>}, {transform_indices = @transform_8, window_bounds = array<i64: 256, 64>}, {pipeline_mode = #tpu.pipeline_mode<synchronous>, transform_indices = @transform_9, window_bounds = array<i64: 1, 64>}, {transform_indices = @transform_10, window_bounds = array<i64: 32, 64>}]} {
    %c0_i32 = arith.constant 0 : i32
    %0 = arith.cmpi eq, %arg1, %c0_i32 : i32
    %1 = arith.extui %0 : i1 to i32
    %c0_i32_0 = arith.constant 0 : i32
    %2 = arith.cmpi ne, %1, %c0_i32_0 : i32
    scf.if %2 {
      %c0_18 = arith.constant 0 : index
      %c0_19 = arith.constant 0 : index
      %26 = vector.load %arg5[%c0_18, %c0_19] : memref<32x64xf32, #tpu.memory_space<vmem>>, vector<32x64xf32>
      %c0_20 = arith.constant 0 : index
      %c0_21 = arith.constant 0 : index
      %27 = vector.load %arg2[%c0_20, %c0_21] : memref<32x64xbf16, #tpu.memory_space<vmem>>, vector<32x64xbf16>
      %c0_22 = arith.constant 0 : index
      %c0_23 = arith.constant 0 : index
      %28 = vector.load %arg3[%c0_22, %c0_23] : memref<64x64xbf16, #tpu.memory_space<vmem>>, vector<64x64xbf16>
      %cst_24 = arith.constant dense<0.000000e+00> : vector<32x64xf32>
      %29 = tpu.matmul %27, %28, %cst_24 {dimension_numbers = #tpu.dot_dimension_numbers<[1], [0], [0], [1], [0, 0, 1, 1], [], []>} : vector<32x64xbf16>, vector<64x64xbf16>, vector<32x64xf32> -> vector<32x64xf32>
      %30 = arith.addf %26, %29 : vector<32x64xf32>
      %c0_25 = arith.constant 0 : index
      %c0_26 = arith.constant 0 : index
      %31 = vector.load %arg4[%c0_25, %c0_26] : memref<1x64xf32, #tpu.memory_space<vmem>>, vector<1x64xf32>
      %32 = vector.broadcast %31 : vector<1x64xf32> to vector<32x64xf32>
      %33 = arith.addf %30, %32 : vector<32x64xf32>
      %cst_27 = arith.constant dense<0.000000e+00> : vector<32xf32>
      %34 = vector.multi_reduction <add>, %33, %cst_27 [1] : vector<32x64xf32> to vector<32xf32>
      %35 = vector.shape_cast %34 : vector<32xf32> to vector<32x1xf32>
      %cst_28 = arith.constant 6.400000e+01 : f32
      %36 = vector.broadcast %cst_28 : f32 to vector<32x1xf32>
      %37 = arith.divf %35, %36 : vector<32x1xf32>
      %38 = vector.broadcast %37 : vector<32x1xf32> to vector<32x64xf32>
      %39 = arith.subf %33, %38 : vector<32x64xf32>
      %40 = arith.mulf %39, %39 : vector<32x64xf32>
      %cst_29 = arith.constant dense<0.000000e+00> : vector<32xf32>
      %41 = vector.multi_reduction <add>, %40, %cst_29 [1] : vector<32x64xf32> to vector<32xf32>
      %42 = vector.shape_cast %41 : vector<32xf32> to vector<32x1xf32>
      %cst_30 = arith.constant 6.400000e+01 : f32
      %43 = vector.broadcast %cst_30 : f32 to vector<32x1xf32>
      %44 = arith.divf %42, %43 : vector<32x1xf32>
      %45 = vector.broadcast %37 : vector<32x1xf32> to vector<32x64xf32>
      %46 = arith.subf %33, %45 : vector<32x64xf32>
      %cst_31 = arith.constant 9.99999974E-6 : f32
      %47 = vector.broadcast %cst_31 : f32 to vector<32x1xf32>
      %48 = arith.addf %44, %47 : vector<32x1xf32>
      %49 = math.rsqrt %48 : vector<32x1xf32>
      %50 = vector.broadcast %49 : vector<32x1xf32> to vector<32x64xf32>
      %51 = arith.mulf %46, %50 : vector<32x64xf32>
      %c0_32 = arith.constant 0 : index
      %c0_33 = arith.constant 0 : index
      %52 = vector.load %arg6[%c0_32, %c0_33] : memref<1x64xf32, #tpu.memory_space<vmem>>, vector<1x64xf32>
      %53 = vector.broadcast %52 : vector<1x64xf32> to vector<32x64xf32>
      %54 = arith.mulf %51, %53 : vector<32x64xf32>
      %c0_34 = arith.constant 0 : index
      %c0_35 = arith.constant 0 : index
      %55 = vector.load %arg7[%c0_34, %c0_35] : memref<1x64xf32, #tpu.memory_space<vmem>>, vector<1x64xf32>
      %56 = vector.broadcast %55 : vector<1x64xf32> to vector<32x64xf32>
      %57 = arith.addf %54, %56 : vector<32x64xf32>
      %58 = arith.truncf %57 : vector<32x64xf32> to vector<32x64xbf16>
      %c0_36 = arith.constant 0 : index
      %c0_37 = arith.constant 0 : index
      %59 = vector.load %arg13[%c0_36, %c0_37] : memref<32x64xbf16, #tpu.memory_space<vmem>>, vector<32x64xbf16>
      tpu.vector_store %arg13[%c0_36, %c0_37], %58 {strides = array<i32>} : memref<32x64xbf16, #tpu.memory_space<vmem>>, vector<32x64xbf16>,
      %c0_38 = arith.constant 0 : index
      %c0_39 = arith.constant 0 : index
      %60 = vector.load %arg11[%c0_38, %c0_39] : memref<1x64xf32, #tpu.memory_space<vmem>>, vector<1x64xf32>
      %61 = vector.broadcast %60 : vector<1x64xf32> to vector<32x64xf32>
      %62 = arith.addf %33, %61 : vector<32x64xf32>
      %c0_40 = arith.constant 0 : index
      %c0_41 = arith.constant 0 : index
      %63 = vector.load %arg14[%c0_40, %c0_41] : memref<32x64xf32, #tpu.memory_space<vmem>>, vector<32x64xf32>
      tpu.vector_store %arg14[%c0_40, %c0_41], %62 {strides = array<i32>} : memref<32x64xf32, #tpu.memory_space<vmem>>, vector<32x64xf32>,
    } else {
    }
    %c0 = arith.constant 0 : index
    %c0_1 = arith.constant 0 : index
    %3 = vector.load %arg13[%c0, %c0_1] : memref<32x64xbf16, #tpu.memory_space<vmem>>, vector<32x64xbf16>
    %c0_2 = arith.constant 0 : index
    %c0_3 = arith.constant 0 : index
    %4 = vector.load %arg8[%c0_2, %c0_3] : memref<64x256xbf16, #tpu.memory_space<vmem>>, vector<64x256xbf16>
    %cst = arith.constant dense<0.000000e+00> : vector<32x256xf32>
    %5 = tpu.matmul %3, %4, %cst {dimension_numbers = #tpu.dot_dimension_numbers<[1], [0], [0], [1], [0, 0, 1, 1], [], []>} : vector<32x64xbf16>, vector<64x256xbf16>, vector<32x256xf32> -> vector<32x256xf32>
    %c0_4 = arith.constant 0 : index
    %c0_5 = arith.constant 0 : index
    %6 = vector.load %arg9[%c0_4, %c0_5] : memref<1x256xf32, #tpu.memory_space<vmem>>, vector<1x256xf32>
    %7 = vector.broadcast %6 : vector<1x256xf32> to vector<32x256xf32>
    %8 = arith.addf %5, %7 : vector<32x256xf32>
    %cst_6 = arith.constant 5.000000e-01 : f32
    %9 = vector.broadcast %cst_6 : f32 to vector<32x256xf32>
    %10 = arith.mulf %9, %8 : vector<32x256xf32>
    %cst_7 = arith.constant 0.707106769 : f32
    %11 = vector.broadcast %cst_7 : f32 to vector<32x256xf32>
    %12 = arith.mulf %8, %11 : vector<32x256xf32>
    %13 = math.erf %12 : vector<32x256xf32>
    %cst_8 = arith.constant 1.000000e+00 : f32
    %14 = vector.broadcast %cst_8 : f32 to vector<32x256xf32>
    %15 = arith.addf %14, %13 : vector<32x256xf32>
    %16 = arith.mulf %10, %15 : vector<32x256xf32>
    %c0_9 = arith.constant 0 : index
    %c0_10 = arith.constant 0 : index
    %17 = vector.load %arg14[%c0_9, %c0_10] : memref<32x64xf32, #tpu.memory_space<vmem>>, vector<32x64xf32>
    %18 = arith.truncf %16 : vector<32x256xf32> to vector<32x256xbf16>
    %c0_11 = arith.constant 0 : index
    %c0_12 = arith.constant 0 : index
    %19 = vector.load %arg10[%c0_11, %c0_12] : memref<256x64xbf16, #tpu.memory_space<vmem>>, vector<256x64xbf16>
    %cst_13 = arith.constant dense<0.000000e+00> : vector<32x64xf32>
    %20 = tpu.matmul %18, %19, %cst_13 {dimension_numbers = #tpu.dot_dimension_numbers<[1], [0], [0], [1], [0, 0, 1, 1], [], []>} : vector<32x256xbf16>, vector<256x64xbf16>, vector<32x64xf32> -> vector<32x64xf32>
    %21 = arith.addf %17, %20 : vector<32x64xf32>
    %c0_14 = arith.constant 0 : index
    %c0_15 = arith.constant 0 : index
    %22 = vector.load %arg14[%c0_14, %c0_15] : memref<32x64xf32, #tpu.memory_space<vmem>>, vector<32x64xf32>
    tpu.vector_store %arg14[%c0_14, %c0_15], %21 {strides = array<i32>} : memref<32x64xf32, #tpu.memory_space<vmem>>, vector<32x64xf32>,
    %c0_i32_16 = arith.constant 0 : i32
    %23 = arith.cmpi eq, %arg1, %c0_i32_16 : i32
    %24 = arith.extui %23 : i1 to i32
    %c0_i32_17 = arith.constant 0 : i32
    %25 = arith.cmpi ne, %24, %c0_i32_17 : i32
    scf.if %25 {
      %c0_18 = arith.constant 0 : index
      %c0_19 = arith.constant 0 : index
      %26 = vector.load %arg14[%c0_18, %c0_19] : memref<32x64xf32, #tpu.memory_space<vmem>>, vector<32x64xf32>
      %c0_20 = arith.constant 0 : index
      %c0_21 = arith.constant 0 : index
      %27 = vector.load %arg12[%c0_20, %c0_21] : memref<32x64xf32, #tpu.memory_space<vmem>>, vector<32x64xf32>
      tpu.vector_store %arg12[%c0_20, %c0_21], %26 {strides = array<i32>} : memref<32x64xf32, #tpu.memory_space<vmem>>, vector<32x64xf32>,
    } else {
    }
    return
  }
  func.func @transform_0(%arg0: i32, %arg1: i32) -> (i32, i32) {
    %c0_i32 = arith.constant 0 : i32
    %c0_i32_0 = arith.constant 0 : i32
    return %arg0, %c0_i32 : i32, i32
  }
  func.func @transform_1(%arg0: i32, %arg1: i32) -> (i32, i32) {
    %c0_i32 = arith.constant 0 : i32
    %c0_i32_0 = arith.constant 0 : i32
    %c0_i32_1 = arith.constant 0 : i32
    return %c0_i32, %c0_i32_0 : i32, i32
  }
  func.func @transform_2(%arg0: i32, %arg1: i32) -> (i32, i32) {
    %c0_i32 = arith.constant 0 : i32
    %c0_i32_0 = arith.constant 0 : i32
    %c0_i32_1 = arith.constant 0 : i32
    return %c0_i32, %c0_i32_0 : i32, i32
  }
  func.func @transform_3(%arg0: i32, %arg1: i32) -> (i32, i32) {
    %c0_i32 = arith.constant 0 : i32
    %c0_i32_0 = arith.constant 0 : i32
    return %arg0, %c0_i32 : i32, i32
  }
  func.func @transform_4(%arg0: i32, %arg1: i32) -> (i32, i32) {
    %c0_i32 = arith.constant 0 : i32
    %c0_i32_0 = arith.constant 0 : i32
    %c0_i32_1 = arith.constant 0 : i32
    return %c0_i32, %c0_i32_0 : i32, i32
  }
  func.func @transform_5(%arg0: i32, %arg1: i32) -> (i32, i32) {
    %c0_i32 = arith.constant 0 : i32
    %c0_i32_0 = arith.constant 0 : i32
    %c0_i32_1 = arith.constant 0 : i32
    return %c0_i32, %c0_i32_0 : i32, i32
  }
  func.func @transform_6(%arg0: i32, %arg1: i32) -> (i32, i32) {
    %c0_i32 = arith.constant 0 : i32
    %c0_i32_0 = arith.constant 0 : i32
    return %c0_i32, %arg1 : i32, i32
  }
  func.func @transform_7(%arg0: i32, %arg1: i32) -> (i32, i32) {
    %c0_i32 = arith.constant 0 : i32
    %c0_i32_0 = arith.constant 0 : i32
    return %c0_i32, %arg1 : i32, i32
  }
  func.func @transform_8(%arg0: i32, %arg1: i32) -> (i32, i32) {
    %c0_i32 = arith.constant 0 : i32
    %c0_i32_0 = arith.constant 0 : i32
    return %arg1, %c0_i32 : i32, i32
  }
  func.func @transform_9(%arg0: i32, %arg1: i32) -> (i32, i32) {
    %c0_i32 = arith.constant 0 : i32
    %c0_i32_0 = arith.constant 0 : i32
    %c0_i32_1 = arith.constant 0 : i32
    return %c0_i32, %c0_i32_0 : i32, i32
  }
  func.func @transform_10(%arg0: i32, %arg1: i32) -> (i32, i32) {
    %c0_i32 = arith.constant 0 : i32
    %c0_i32_0 = arith.constant 0 : i32
    return %arg0, %c0_i32 : i32, i32
  }
}

module attributes {stable_mosaic.version = 11 : i64} {
  func.func @_lnf_lm_head_kernel(%arg0: i32, %arg1: memref<8x64xf32, #tpu.memory_space<vmem>>, %arg2: memref<1x64xf32, #tpu.memory_space<vmem>>, %arg3: memref<1x64xf32, #tpu.memory_space<vmem>>, %arg4: memref<256x64xbf16, #tpu.memory_space<vmem>>, %arg5: memref<8x256xf32, #tpu.memory_space<vmem>>) attributes {dimension_semantics = [#tpu.dimension_semantics<parallel>], iteration_bounds = array<i64: 1>, scalar_prefetch = 0 : i64, scratch_operands = 0 : i64, tpu.core_type = #tpu.core_type<tc>, window_params = [{pipeline_mode = #tpu.pipeline_mode<synchronous>, transform_indices = @transform_0, window_bounds = array<i64: 8, 64>}, {pipeline_mode = #tpu.pipeline_mode<synchronous>, transform_indices = @transform_1, window_bounds = array<i64: 1, 64>}, {pipeline_mode = #tpu.pipeline_mode<synchronous>, transform_indices = @transform_2, window_bounds = array<i64: 1, 64>}, {transform_indices = @transform_3, window_bounds = array<i64: 256, 64>}, {transform_indices = @transform_4, window_bounds = array<i64: 8, 256>}]} {
    %c0 = arith.constant 0 : index
    %c0_0 = arith.constant 0 : index
    %0 = vector.load %arg1[%c0, %c0_0] : memref<8x64xf32, #tpu.memory_space<vmem>>, vector<8x64xf32>
    %cst = arith.constant dense<0.000000e+00> : vector<8xf32>
    %1 = vector.multi_reduction <add>, %0, %cst [1] : vector<8x64xf32> to vector<8xf32>
    %2 = vector.shape_cast %1 : vector<8xf32> to vector<8x1xf32>
    %cst_1 = arith.constant 6.400000e+01 : f32
    %3 = vector.broadcast %cst_1 : f32 to vector<8x1xf32>
    %4 = arith.divf %2, %3 : vector<8x1xf32>
    %5 = vector.broadcast %4 : vector<8x1xf32> to vector<8x64xf32>
    %6 = arith.subf %0, %5 : vector<8x64xf32>
    %7 = arith.mulf %6, %6 : vector<8x64xf32>
    %cst_2 = arith.constant dense<0.000000e+00> : vector<8xf32>
    %8 = vector.multi_reduction <add>, %7, %cst_2 [1] : vector<8x64xf32> to vector<8xf32>
    %9 = vector.shape_cast %8 : vector<8xf32> to vector<8x1xf32>
    %cst_3 = arith.constant 6.400000e+01 : f32
    %10 = vector.broadcast %cst_3 : f32 to vector<8x1xf32>
    %11 = arith.divf %9, %10 : vector<8x1xf32>
    %12 = vector.broadcast %4 : vector<8x1xf32> to vector<8x64xf32>
    %13 = arith.subf %0, %12 : vector<8x64xf32>
    %cst_4 = arith.constant 9.99999974E-6 : f32
    %14 = vector.broadcast %cst_4 : f32 to vector<8x1xf32>
    %15 = arith.addf %11, %14 : vector<8x1xf32>
    %16 = math.rsqrt %15 : vector<8x1xf32>
    %17 = vector.broadcast %16 : vector<8x1xf32> to vector<8x64xf32>
    %18 = arith.mulf %13, %17 : vector<8x64xf32>
    %c0_5 = arith.constant 0 : index
    %c0_6 = arith.constant 0 : index
    %19 = vector.load %arg2[%c0_5, %c0_6] : memref<1x64xf32, #tpu.memory_space<vmem>>, vector<1x64xf32>
    %20 = vector.broadcast %19 : vector<1x64xf32> to vector<8x64xf32>
    %21 = arith.mulf %18, %20 : vector<8x64xf32>
    %c0_7 = arith.constant 0 : index
    %c0_8 = arith.constant 0 : index
    %22 = vector.load %arg3[%c0_7, %c0_8] : memref<1x64xf32, #tpu.memory_space<vmem>>, vector<1x64xf32>
    %23 = vector.broadcast %22 : vector<1x64xf32> to vector<8x64xf32>
    %24 = arith.addf %21, %23 : vector<8x64xf32>
    %25 = arith.truncf %24 : vector<8x64xf32> to vector<8x64xbf16>
    %c0_9 = arith.constant 0 : index
    %c0_10 = arith.constant 0 : index
    %26 = vector.load %arg4[%c0_9, %c0_10] : memref<256x64xbf16, #tpu.memory_space<vmem>>, vector<256x64xbf16>
    %cst_11 = arith.constant dense<0.000000e+00> : vector<8x256xf32>
    %27 = tpu.matmul %25, %26, %cst_11 {dimension_numbers = #tpu.dot_dimension_numbers<[1], [1], [0], [0], [0, 0, 1, 0], [], []>} : vector<8x64xbf16>, vector<256x64xbf16>, vector<8x256xf32> -> vector<8x256xf32>
    %c0_12 = arith.constant 0 : index
    %c0_13 = arith.constant 0 : index
    %28 = vector.load %arg5[%c0_12, %c0_13] : memref<8x256xf32, #tpu.memory_space<vmem>>, vector<8x256xf32>
    tpu.vector_store %arg5[%c0_12, %c0_13], %27 {strides = array<i32>} : memref<8x256xf32, #tpu.memory_space<vmem>>, vector<8x256xf32>,
    return
  }
  func.func @transform_0(%arg0: i32) -> (i32, i32) {
    %c0_i32 = arith.constant 0 : i32
    %c0_i32_0 = arith.constant 0 : i32
    %c0_i32_1 = arith.constant 0 : i32
    return %c0_i32, %c0_i32_0 : i32, i32
  }
  func.func @transform_1(%arg0: i32) -> (i32, i32) {
    %c0_i32 = arith.constant 0 : i32
    %c0_i32_0 = arith.constant 0 : i32
    %c0_i32_1 = arith.constant 0 : i32
    return %c0_i32, %c0_i32_0 : i32, i32
  }
  func.func @transform_2(%arg0: i32) -> (i32, i32) {
    %c0_i32 = arith.constant 0 : i32
    %c0_i32_0 = arith.constant 0 : i32
    %c0_i32_1 = arith.constant 0 : i32
    return %c0_i32, %c0_i32_0 : i32, i32
  }
  func.func @transform_3(%arg0: i32) -> (i32, i32) {
    %c0_i32 = arith.constant 0 : i32
    %c0_i32_0 = arith.constant 0 : i32
    return %arg0, %c0_i32 : i32, i32
  }
  func.func @transform_4(%arg0: i32) -> (i32, i32) {
    %c0_i32 = arith.constant 0 : i32
    %c0_i32_0 = arith.constant 0 : i32
    return %c0_i32, %arg0 : i32, i32
  }
}

</mosaic_0001>

<llo_original>
// kernel: gpt_forward.7
$region0: #{gpt_forward.7}
  #allocation0 [shape = 'u32[]', space=smem, size = 0x4, offset = 0x4, fixed_abs, tag = 'smem constant byte address 0x4 - core index']
  #allocation1 [shape = 'u32[144,128]{1,0:T(1,128)}', space=vmem, size = 0x12000, scoped, tag = 'internal scratch']
  #allocation2 [shape = 'bf16[32,64]{1,0:T(16,128)(2,1)}', space=vmem, size = 0x2000, scoped, tag = 'scratch operand']
  %s0 = inlined_call_operand.vmem [shape: f32[32,64], index: 0, kind: input, shape index: {}]
  %s1 = inlined_call_operand.vmem [shape: f32[1,64], index: 1, kind: input, shape index: {}]
  %s2 = inlined_call_operand.vmem [shape: f32[1,64], index: 2, kind: input, shape index: {}]
  %s3 = inlined_call_operand.vmem [shape: bf16[64,192], index: 3, kind: input, shape index: {}]
  %s4 = inlined_call_operand.vmem [shape: f32[1,192], index: 4, kind: input, shape index: {}]
  %s5 = inlined_call_operand.vmem [shape: bf16[32,192], index: 5, kind: output, shape index: {}]
  %s6 = sld [smem:[#allocation0]]
  $region34: #{gpt_forward.7} parent=0
    _
  %s8 = ssub.s32 1, %s6
  %s9 = scalar_select 0, %s8, %s6
  // Predicated region
  $region2: #{gpt_forward.7} parent=0 // pred_check
    _
  $region3: #{gpt_forward.7} parent=0 // pred_check_branch
    %11 = sbr.rel (0) target = $region5
  $region4: #{gpt_forward.7} parent=0 // pred_region
    _
  $region5: #{gpt_forward.7} parent=0 // pred_fallthru
    _
  // Predicated region
  $region6: #{gpt_forward.7} parent=0 // pred_check
    _
  $region7: #{gpt_forward.7} parent=0 // pred_check_branch
    %13 = sbr.rel (0) target = $region9
  $region8: #{gpt_forward.7} parent=0 // pred_region
    _
  $region9: #{gpt_forward.7} parent=0 // pred_fallthru
    _
  // Predicated region
  $region10: #{gpt_forward.7} parent=0 // pred_check
    _
  $region11: #{gpt_forward.7} parent=0 // pred_check_branch
    %15 = sbr.rel (0) target = $region13
  $region12: #{gpt_forward.7} parent=0 // pred_region
    _
  $region13: #{gpt_forward.7} parent=0 // pred_fallthru
    _
  // Predicated region
  $region14: #{gpt_forward.7} parent=0 // pred_check
    _
  $region15: #{gpt_forward.7} parent=0 // pred_check_branch
    %17 = sbr.rel (0) target = $region17
  $region16: #{gpt_forward.7} parent=0 // pred_region
    _
  $region17: #{gpt_forward.7} parent=0 // pred_fallthru
    _
  // Predicated region
  $region18: #{gpt_forward.7} parent=0 // pred_check
    _
  $region19: #{gpt_forward.7} parent=0 // pred_check_branch
    %19 = sbr.rel (0) target = $region21
  $region20: #{gpt_forward.7} parent=0 // pred_region
    _
  $region21: #{gpt_forward.7} parent=0 // pred_fallthru
    _
  %p21 = scmp.eq.s32.totalorder 0, 0
  // Predicated region
  $region22: #{gpt_forward.7} parent=0 // pred_check
    %p22 = pneg %p21
  $region23: #{gpt_forward.7} parent=0 // pred_check_branch
    %24 = sbr.rel (%p22) target = $region25
  $region24: #{gpt_forward.7} parent=0 // pred_region
    %v25 = vld [vmem:[%s0] sm:$0xff]
    %v26 = vld [vmem:[%s0 + $0x8] sm:$0xff]
    %v27 = vld [vmem:[%s0 + $0x10] sm:$0xff]
    %v28 = vld [vmem:[%s0 + $0x18] sm:$0xff]
    %vm29 = vcmask 523264
    %v30 = vsel %vm29, %v25, 0.0
    %31 = vadd.xlane.f32.xlu0 %v30
    %v32 = vpop.xlane.xlu0 %31
    %v33 = vsel %vm29, %v26, 0.0
    %34 = vadd.xlane.f32.xlu0 %v33
    %v35 = vpop.xlane.xlu0 %34
    %v36 = vsel %vm29, %v27, 0.0
    %37 = vadd.xlane.f32.xlu0 %v36
    %v38 = vpop.xlane.xlu0 %37
    %v39 = vsel %vm29, %v28, 0.0
    %40 = vadd.xlane.f32.xlu0 %v39
    %v41 = vpop.xlane.xlu0 %40
    %v42 = vrcp.pop 64.0
    %v43 = vmul.f32 %v32, %v42
    %v44 = vmul.f32 %v35, %v42
    %v45 = vmul.f32 %v38, %v42
    %v46 = vmul.f32 %v41, %v42
    %v47 = vsub.f32 %v25, %v43
    %v48 = vsub.f32 %v26, %v44
    %v49 = vsub.f32 %v27, %v45
    %v50 = vsub.f32 %v28, %v46
    %v51 = vmul.f32 %v47, %v47
    %v52 = vmul.f32 %v48, %v48
    %v53 = vmul.f32 %v49, %v49
    %v54 = vmul.f32 %v50, %v50
    %v55 = vsel %vm29, %v51, 0.0
    %56 = vadd.xlane.f32.xlu0 %v55
    %v57 = vpop.xlane.xlu0 %56
    %v58 = vsel %vm29, %v52, 0.0
    %59 = vadd.xlane.f32.xlu0 %v58
    %v60 = vpop.xlane.xlu0 %59
    %v61 = vsel %vm29, %v53, 0.0
    %62 = vadd.xlane.f32.xlu0 %v61
    %v63 = vpop.xlane.xlu0 %62
    %v64 = vsel %vm29, %v54, 0.0
    %65 = vadd.xlane.f32.xlu0 %v64
    %v66 = vpop.xlane.xlu0 %65
    %v67 = vmul.f32 %v57, %v42
    %v68 = vmul.f32 %v60, %v42
    %v69 = vmul.f32 %v63, %v42
    %v70 = vmul.f32 %v66, %v42
    %v71 = vadd.f32 %v67, 1e-05
    %v72 = vadd.f32 %v68, 1e-05
    %v73 = vadd.f32 %v69, 1e-05
    %v74 = vadd.f32 %v70, 1e-05
    %v75 = vrsqrt.pop %v71
    %v76 = vrsqrt.pop %v72
    %v77 = vrsqrt.pop %v73
    %v78 = vrsqrt.pop %v74
    %v79 = vmul.f32 %v47, %v75
    %v80 = vmul.f32 %v48, %v76
    %v81 = vmul.f32 %v49, %v77
    %v82 = vmul.f32 %v50, %v78
    %v83 = vld [vmem:[%s1] sm:$0x1]
    %v85 = vlaneseq
    %v86 = vshrl.u32 %v85, 7
    %v87 = vsub.s32 0, %v86
    %v88 = vrot.slane %v83, %v87
    %v90 = vmul.f32 %v79, %v88
    %v91 = vmul.f32 %v80, %v88
    %v92 = vmul.f32 %v81, %v88
    %v93 = vmul.f32 %v82, %v88
    %v94 = vld [vmem:[%s2] sm:$0x1]
    %v96 = vlaneseq
    %v97 = vshrl.u32 %v96, 7
    %v98 = vsub.s32 0, %v97
    %v99 = vrot.slane %v94, %v98
    %v101 = vadd.f32 %v90, %v99
    %v102 = vadd.f32 %v91, %v99
    %v103 = vadd.f32 %v92, %v99
    %v104 = vadd.f32 %v93, %v99
    %v105 = vpack.c.bf16 %v102, %v101
    %v106 = vpack.c.bf16 %v104, %v103
    %107 = vst.msk [vmem:[#allocation2] sm:$0xff] %vm29, %v105
    %108 = vst.msk [vmem:[#allocation2 + $0x8] sm:$0xff] %vm29, %v106
  $region25: #{gpt_forward.7} parent=0 // pred_fallthru
    _
  %v109 = vld [vmem:[#allocation2] sm:$0xff]
  %v110 = vld [vmem:[#allocation2 + $0x8] sm:$0xff]
  %v111 = vld [vmem:[%s3] sm:$0xff]
  %v112 = vld [vmem:[%s3 + $0x8] sm:$0xff]
  %v113 = vld [vmem:[%s3 + $0x10] sm:$0xff]
  %v114 = vld [vmem:[%s3 + $0x18] sm:$0xff]
  %v115 = vld [vmem:[%s3 + $0x20] sm:$0xff]
  %v116 = vld [vmem:[%s3 + $0x28] sm:$0xff]
  %v117 = vld [vmem:[%s3 + $0x30] sm:$0xff]
  %v118 = vld [vmem:[%s3 + $0x38] sm:$0xff]
  %v119 = vld [vmem:[%s4] sm:$0x3]
  %v121 = vlaneseq
  %v122 = vshrl.u32 %v121, 7
  %v123 = vsub.s32 0, %v122
  %v124 = vrot.slane %v119, %v123
  %v125 = vlaneseq
  %v126 = vshrl.u32 %v125, 7
  %v127 = vsub.s32 1, %v126
  %v128 = vrot.slane %v119, %v127
  %v139 = vunpack.c.l.b16 %v111
  %v140 = vunpack.c.h.b16 %v111
  %v141 = vunpack.c.l.b16 %v112
  %v142 = vunpack.c.h.b16 %v112
  %v143 = vunpack.c.l.b16 %v113
  %v144 = vunpack.c.h.b16 %v113
  %v145 = vunpack.c.l.b16 %v114
  %v146 = vunpack.c.h.b16 %v114
  %v147 = vunpack.c.l.b16 %v115
  %v148 = vunpack.c.h.b16 %v115
  %v149 = vunpack.c.l.b16 %v116
  %v150 = vunpack.c.h.b16 %v116
  %v151 = vunpack.c.l.b16 %v117
  %v152 = vunpack.c.h.b16 %v117
  %v153 = vunpack.c.l.b16 %v118
  %v154 = vunpack.c.h.b16 %v118
  %v155 = vpack.c.b16 %v141, %v139
  %v156 = vpack.c.b16 %v142, %v140
  %v157 = vpack.c.b16 %v145, %v143
  %v158 = vpack.c.b16 %v146, %v144
  %v159 = vpack.c.b16 %v149, %v147
  %v160 = vpack.c.b16 %v150, %v148
  %v161 = vpack.c.b16 %v153, %v151
  %v162 = vpack.c.b16 %v154, %v152
  %vm171 = vcmask 523264
  %v173 = vsel %vm171, %v109, 0
  %v176 = vsel %vm171, %v110, 0
  %178 = vmatprep.subr.bf16.mxu0 %v156
  %179 = vmatpush1.bf16.msra.mxu0 %v155
  %180 = vmatprep.subr.bf16.mxu0 %v158
  %181 = vmatpush1.bf16.msra.mxu0 %v157
  %182 = vmatprep.subr.bf16.mxu0 %v160
  %183 = vmatpush1.bf16.msra.mxu0 %v159
  %184 = vmatprep.subr.bf16.mxu0 %v162
  %185 = vmatpush1.bf16.msra.mxu0 %v161
  %186 = vmatprep.subr.bf16.mxu0 0
  %187 = vmatpush1.bf16.msra.mxu0 0
  %188 = vmatprep.subr.bf16.mxu0 0
  %189 = vmatpush1.bf16.msra.mxu0 0
  %190 = vmatprep.subr.bf16.mxu0 0
  %191 = vmatpush1.bf16.msra.mxu0 0
  %192 = vmatprep.subr.bf16.mxu0 0
  %193 = vmatpush1.bf16.msra.mxu0 0
  %194 = vmatprep.subr.bf16.mxu0 0
  %195 = vmatpush1.bf16.msra.mxu0 0
  %196 = vmatprep.subr.bf16.mxu0 0
  %197 = vmatpush1.bf16.msra.mxu0 0
  %198 = vmatprep.subr.bf16.mxu0 0
  %199 = vmatpush1.bf16.msra.mxu0 0
  %200 = vmatprep.subr.bf16.mxu0 0
  %201 = vmatpush1.bf16.msra.mxu0 0
  %202 = vmatprep.subr.bf16.mxu0 0
  %203 = vmatpush1.bf16.msra.mxu0 0
  %204 = vmatprep.subr.bf16.mxu0 0
  %205 = vmatpush1.bf16.msra.mxu0 0
  %206 = vmatprep.subr.bf16.mxu0 0
  %207 = vmatpush1.bf16.msra.mxu0 0
  %208 = vmatprep.subr.bf16.mxu0 0
  %209 = vmatpush1.bf16.msra.mxu0 0
  %210 = vmatprep.mubr.bf16.mxu0 0
  %211 = vmatmul.mubr.bf16.gmra.mrb[0].mxu0 %v173
  %v212 = vpop.f32.mrb[0].mxu0
  %v213 = vadd.f32 %v124, %v212
  %v214 = vpop.f32.mrb[0].mxu0
  %v215 = vadd.f32 %v128, %v214
  %v216 = vpop.f32.mrb[0].mxu0
  %v217 = vadd.f32 %v124, %v216
  %v218 = vpop.f32.mrb[0].mxu0
  %v219 = vadd.f32 %v128, %v218
  %220 = vmatprep.mubr.bf16.mxu0 0
  %221 = vmatmul.mubr.bf16.gmra.mrb[0].mxu0 %v176
  %v222 = vpop.f32.mrb[0].mxu0
  %v223 = vadd.f32 %v124, %v222
  %v224 = vpop.f32.mrb[0].mxu0
  %v225 = vadd.f32 %v128, %v224
  %v226 = vpop.f32.mrb[0].mxu0
  %v227 = vadd.f32 %v124, %v226
  %v228 = vpop.f32.mrb[0].mxu0
  %v229 = vadd.f32 %v128, %v228
  %230 = vdwg.mxu0
  %v231 = vpack.c.bf16 %v217, %v213
  %v232 = vpack.c.bf16 %v219, %v215
  %v233 = vpack.c.bf16 %v227, %v223
  %v234 = vpack.c.bf16 %v229, %v225
  %v239 = vunpack.c.l.b16 %v231
  %v240 = vunpack.c.l.b16 %v232
  %v241 = vunpack.c.h.b16 %v231
  %v242 = vunpack.c.h.b16 %v232
  %v243 = vunpack.c.l.b16 %v233
  %v244 = vunpack.c.l.b16 %v234
  %v245 = vunpack.c.h.b16 %v233
  %v246 = vunpack.c.h.b16 %v234
  %v247 = vpack.c.b16 %v240, %v239
  %v248 = vpack.c.b16 %v242, %v241
  %v249 = vpack.c.b16 %v244, %v243
  %v250 = vpack.c.b16 %v246, %v245
  %vm255 = vcmask 1043456
  %vm256 = vcmask 523268
  %vm257 = vmor %vm256, %vm255
  %258 = vst.msk [vmem:[%s5] sm:$0xff] %vm257, %v247
  %259 = vst.msk [vmem:[%s5 + $0x8] sm:$0xff] %vm257, %v248
  %260 = vst.msk [vmem:[%s5 + $0x10] sm:$0xff] %vm257, %v249
  %261 = vst.msk [vmem:[%s5 + $0x18] sm:$0xff] %vm257, %v250
  // Predicated region
  $region26: #{gpt_forward.7} parent=0 // pred_check
    _
  $region27: #{gpt_forward.7} parent=0 // pred_check_branch
    %263 = sbr.rel (0) target = $region29
  $region28: #{gpt_forward.7} parent=0 // pred_region
    _
  $region29: #{gpt_forward.7} parent=0 // pred_fallthru
    _
  // Predicated region
  $region30: #{gpt_forward.7} parent=0 // pred_check
    _
  $region31: #{gpt_forward.7} parent=0 // pred_check_branch
    %265 = sbr.rel (0) target = $region33
  $region32: #{gpt_forward.7} parent=0 // pred_region
    _
  $region33: #{gpt_forward.7} parent=0 // pred_fallthru
    _

// kernel: gpt_forward.13
$region0: #{gpt_forward.13}
  #allocation0 [shape = 'u32[]', space=smem, size = 0x4, offset = 0x4, fixed_abs, tag = 'smem constant byte address 0x4 - core index']
  #allocation1 [shape = 'u32[144,128]{1,0:T(1,128)}', space=vmem, size = 0x12000, scoped, tag = 'internal scratch']
  %s0 = inlined_call_operand.vmem [shape: f32[8,64], index: 0, kind: input, shape index: {}]
  %s1 = inlined_call_operand.vmem [shape: f32[1,64], index: 1, kind: input, shape index: {}]
  %s2 = inlined_call_operand.vmem [shape: f32[1,64], index: 2, kind: input, shape index: {}]
  %s3 = inlined_call_operand.vmem [shape: bf16[256,64], index: 3, kind: input, shape index: {}]
  %s4 = inlined_call_operand.vmem [shape: f32[8,256], index: 4, kind: output, shape index: {}]
  %s5 = sld [smem:[#allocation0]]
  $region26: #{gpt_forward.13} parent=0
    _
  %s7 = ssub.s32 1, %s5
  %s8 = scalar_select 0, %s7, %s5
  // Predicated region
  $region2: #{gpt_forward.13} parent=0 // pred_check
    _
  $region3: #{gpt_forward.13} parent=0 // pred_check_branch
    %10 = sbr.rel (0) target = $region5
  $region4: #{gpt_forward.13} parent=0 // pred_region
    _
  $region5: #{gpt_forward.13} parent=0 // pred_fallthru
    _
  // Predicated region
  $region6: #{gpt_forward.13} parent=0 // pred_check
    _
  $region7: #{gpt_forward.13} parent=0 // pred_check_branch
    %12 = sbr.rel (0) target = $region9
  $region8: #{gpt_forward.13} parent=0 // pred_region
    _
  $region9: #{gpt_forward.13} parent=0 // pred_fallthru
    _
  // Predicated region
  $region10: #{gpt_forward.13} parent=0 // pred_check
    _
  $region11: #{gpt_forward.13} parent=0 // pred_check_branch
    %14 = sbr.rel (0) target = $region13
  $region12: #{gpt_forward.13} parent=0 // pred_region
    _
  $region13: #{gpt_forward.13} parent=0 // pred_fallthru
    _
  // Predicated region
  $region14: #{gpt_forward.13} parent=0 // pred_check
    _
  $region15: #{gpt_forward.13} parent=0 // pred_check_branch
    %16 = sbr.rel (0) target = $region17
  $region16: #{gpt_forward.13} parent=0 // pred_region
    _
  $region17: #{gpt_forward.13} parent=0 // pred_fallthru
    _
  %v18 = vld [vmem:[%s0] sm:$0xff]
  %vm19 = vcmask 523264
  %v20 = vsel %vm19, %v18, 0.0
  %21 = vadd.xlane.f32.xlu0 %v20
  %v22 = vpop.xlane.xlu0 %21
  %v23 = vrcp.pop 64.0
  %v24 = vmul.f32 %v22, %v23
  %v25 = vsub.f32 %v18, %v24
  %v26 = vmul.f32 %v25, %v25
  %v27 = vsel %vm19, %v26, 0.0
  %28 = vadd.xlane.f32.xlu0 %v27
  %v29 = vpop.xlane.xlu0 %28
  %v30 = vmul.f32 %v29, %v23
  %v31 = vadd.f32 %v30, 1e-05
  %v32 = vrsqrt.pop %v31
  %v33 = vmul.f32 %v25, %v32
  %v34 = vld [vmem:[%s1] sm:$0x1]
  %v36 = vlaneseq
  %v37 = vshrl.u32 %v36, 7
  %v38 = vsub.s32 0, %v37
  %v39 = vrot.slane %v34, %v38
  %v41 = vmul.f32 %v33, %v39
  %v42 = vld [vmem:[%s2] sm:$0x1]
  %v44 = vlaneseq
  %v45 = vshrl.u32 %v44, 7
  %v46 = vsub.s32 0, %v45
  %v47 = vrot.slane %v42, %v46
  %v49 = vadd.f32 %v41, %v47
  %v50 = vpack.c.bf16 %v49, %v49
  %v51 = vld [vmem:[%s3] sm:$0xf]
  %v52 = vld [vmem:[%s3 + $0x4] sm:$0xf]
  %v53 = vld [vmem:[%s3 + $0x8] sm:$0xf]
  %v54 = vld [vmem:[%s3 + $0xc] sm:$0xf]
  %v55 = vld [vmem:[%s3 + $0x10] sm:$0xf]
  %v56 = vld [vmem:[%s3 + $0x14] sm:$0xf]
  %v57 = vld [vmem:[%s3 + $0x18] sm:$0xf]
  %v58 = vld [vmem:[%s3 + $0x1c] sm:$0xf]
  %v59 = vld [vmem:[%s3 + $0x20] sm:$0xf]
  %v60 = vld [vmem:[%s3 + $0x24] sm:$0xf]
  %v61 = vld [vmem:[%s3 + $0x28] sm:$0xf]
  %v62 = vld [vmem:[%s3 + $0x2c] sm:$0xf]
  %v63 = vld [vmem:[%s3 + $0x30] sm:$0xf]
  %v64 = vld [vmem:[%s3 + $0x34] sm:$0xf]
  %v65 = vld [vmem:[%s3 + $0x38] sm:$0xf]
  %v66 = vld [vmem:[%s3 + $0x3c] sm:$0xf]
  %v67 = vld [vmem:[%s3 + $0x40] sm:$0xf]
  %v68 = vld [vmem:[%s3 + $0x44] sm:$0xf]
  %v69 = vld [vmem:[%s3 + $0x48] sm:$0xf]
  %v70 = vld [vmem:[%s3 + $0x4c] sm:$0xf]
  %v71 = vld [vmem:[%s3 + $0x50] sm:$0xf]
  %v72 = vld [vmem:[%s3 + $0x54] sm:$0xf]
  %v73 = vld [vmem:[%s3 + $0x58] sm:$0xf]
  %v74 = vld [vmem:[%s3 + $0x5c] sm:$0xf]
  %v75 = vld [vmem:[%s3 + $0x60] sm:$0xf]
  %v76 = vld [vmem:[%s3 + $0x64] sm:$0xf]
  %v77 = vld [vmem:[%s3 + $0x68] sm:$0xf]
  %v78 = vld [vmem:[%s3 + $0x6c] sm:$0xf]
  %v79 = vld [vmem:[%s3 + $0x70] sm:$0xf]
  %v80 = vld [vmem:[%s3 + $0x74] sm:$0xf]
  %v81 = vld [vmem:[%s3 + $0x78] sm:$0xf]
  %v82 = vld [vmem:[%s3 + $0x7c] sm:$0xf]
  %v115 = vunpack.c.l.b16 %v51
  %v116 = vunpack.c.l.b16 %v52
  %v117 = vunpack.c.l.b16 %v53
  %v118 = vunpack.c.l.b16 %v54
  %v119 = vunpack.c.l.b16 %v55
  %v120 = vunpack.c.l.b16 %v56
  %v121 = vunpack.c.l.b16 %v57
  %v122 = vunpack.c.l.b16 %v58
  %v123 = vunpack.c.l.b16 %v59
  %v124 = vunpack.c.l.b16 %v60
  %v125 = vunpack.c.l.b16 %v61
  %v126 = vunpack.c.l.b16 %v62
  %v127 = vunpack.c.l.b16 %v63
  %v128 = vunpack.c.l.b16 %v64
  %v129 = vunpack.c.l.b16 %v65
  %v130 = vunpack.c.l.b16 %v66
  %v131 = vunpack.c.l.b16 %v67
  %v132 = vunpack.c.l.b16 %v68
  %v133 = vunpack.c.l.b16 %v69
  %v134 = vunpack.c.l.b16 %v70
  %v135 = vunpack.c.l.b16 %v71
  %v136 = vunpack.c.l.b16 %v72
  %v137 = vunpack.c.l.b16 %v73
  %v138 = vunpack.c.l.b16 %v74
  %v139 = vunpack.c.l.b16 %v75
  %v140 = vunpack.c.l.b16 %v76
  %v141 = vunpack.c.l.b16 %v77
  %v142 = vunpack.c.l.b16 %v78
  %v143 = vunpack.c.l.b16 %v79
  %v144 = vunpack.c.l.b16 %v80
  %v145 = vunpack.c.l.b16 %v81
  %v146 = vunpack.c.l.b16 %v82
  %v147 = vpack.c.b16 %v116, %v115
  %v148 = vpack.c.b16 %v118, %v117
  %v149 = vpack.c.b16 %v120, %v119
  %v150 = vpack.c.b16 %v122, %v121
  %v151 = vpack.c.b16 %v124, %v123
  %v152 = vpack.c.b16 %v126, %v125
  %v153 = vpack.c.b16 %v128, %v127
  %v154 = vpack.c.b16 %v130, %v129
  %v155 = vpack.c.b16 %v132, %v131
  %v156 = vpack.c.b16 %v134, %v133
  %v157 = vpack.c.b16 %v136, %v135
  %v158 = vpack.c.b16 %v138, %v137
  %v159 = vpack.c.b16 %v140, %v139
  %v160 = vpack.c.b16 %v142, %v141
  %v161 = vpack.c.b16 %v144, %v143
  %v162 = vpack.c.b16 %v146, %v145
  %v164 = vsel %vm19, %v50, 0
  %v167 = vsel %vm19, %v147, 0
  %v170 = vsel %vm19, %v148, 0
  %v173 = vsel %vm19, %v149, 0
  %v176 = vsel %vm19, %v150, 0
  %v179 = vsel %vm19, %v151, 0
  %v182 = vsel %vm19, %v152, 0
  %v185 = vsel %vm19, %v153, 0
  %v188 = vsel %vm19, %v154, 0
  %v191 = vsel %vm19, %v155, 0
  %v194 = vsel %vm19, %v156, 0
  %v197 = vsel %vm19, %v157, 0
  %v200 = vsel %vm19, %v158, 0
  %v203 = vsel %vm19, %v159, 0
  %v206 = vsel %vm19, %v160, 0
  %v209 = vsel %vm19, %v161, 0
  %v212 = vsel %vm19, %v162, 0
  %214 = vmatprep.subr.bf16.mxu0 0
  %215 = vmatpush1.bf16.xpose.msra.mxu0 %v167
  %216 = vmatprep.subr.bf16.mxu0 0
  %217 = vmatpush1.bf16.xpose.msra.mxu0 %v170
  %218 = vmatprep.subr.bf16.mxu0 0
  %219 = vmatpush1.bf16.xpose.msra.mxu0 %v173
  %220 = vmatprep.subr.bf16.mxu0 0
  %221 = vmatpush1.bf16.xpose.msra.mxu0 %v176
  %222 = vmatprep.subr.bf16.mxu0 0
  %223 = vmatpush1.bf16.xpose.msra.mxu0 %v179
  %224 = vmatprep.subr.bf16.mxu0 0
  %225 = vmatpush1.bf16.xpose.msra.mxu0 %v182
  %226 = vmatprep.subr.bf16.mxu0 0
  %227 = vmatpush1.bf16.xpose.msra.mxu0 %v185
  %228 = vmatprep.subr.bf16.mxu0 0
  %229 = vmatpush1.bf16.xpose.msra.mxu0 %v188
  %230 = vmatprep.subr.bf16.mxu0 0
  %231 = vmatpush1.bf16.xpose.msra.mxu0 %v191
  %232 = vmatprep.subr.bf16.mxu0 0
  %233 = vmatpush1.bf16.xpose.msra.mxu0 %v194
  %234 = vmatprep.subr.bf16.mxu0 0
  %235 = vmatpush1.bf16.xpose.msra.mxu0 %v197
  %236 = vmatprep.subr.bf16.mxu0 0
  %237 = vmatpush1.bf16.xpose.msra.mxu0 %v200
  %238 = vmatprep.subr.bf16.mxu0 0
  %239 = vmatpush1.bf16.xpose.msra.mxu0 %v203
  %240 = vmatprep.subr.bf16.mxu0 0
  %241 = vmatpush1.bf16.xpose.msra.mxu0 %v206
  %242 = vmatprep.subr.bf16.mxu0 0
  %243 = vmatpush1.bf16.xpose.msra.mxu0 %v209
  %244 = vmatprep.subr.bf16.mxu0 0
  %245 = vmatpush1.bf16.xpose.msra.mxu0 %v212
  %246 = vmatprep.mubr.bf16.mxu0 0
  %247 = vmatmul.mubr.bf16.gmra.mrb[0].mxu0 %v164
  %v248 = vpop.f32.mrb[0].mxu0
  %v249 = vadd.f32 0.0, %v248
  %v250 = vpop.f32.mrb[0].mxu0
  %v251 = vadd.f32 0.0, %v250
  %v252 = vpop.f32.mrb[0].mxu0
  %v253 = vpop.f32.mrb[0].mxu0
  %254 = vdwg.mxu0
  %255 = vst [vmem:[%s4] sm:$0xff] %v249
  %256 = vst [vmem:[%s4 + $0x8] sm:$0xff] %v251
  // Predicated region
  $region18: #{gpt_forward.13} parent=0 // pred_check
    _
  $region19: #{gpt_forward.13} parent=0 // pred_check_branch
    %258 = sbr.rel (0) target = $region21
  $region20: #{gpt_forward.13} parent=0 // pred_region
    _
  $region21: #{gpt_forward.13} parent=0 // pred_fallthru
    _
  // Predicated region
  $region22: #{gpt_forward.13} parent=0 // pred_check
    _
  $region23: #{gpt_forward.13} parent=0 // pred_check_branch
    %260 = sbr.rel (0) target = $region25
  $region24: #{gpt_forward.13} parent=0 // pred_region
    _
  $region25: #{gpt_forward.13} parent=0 // pred_fallthru
    _

// kernel: gpt_forward.8
$region0: #{gpt_forward.8}
  #allocation0 [shape = 'u32[]', space=smem, size = 0x4, offset = 0x4, fixed_abs, tag = 'smem constant byte address 0x4 - core index']
  #allocation1 [shape = 'u32[144,128]{1,0:T(1,128)}', space=vmem, size = 0x12000, scoped, tag = 'internal scratch']
  %s0 = inlined_call_operand.vmem [shape: bf16[2,16,192], index: 0, kind: input, shape index: {}]
  %s1 = inlined_call_operand.vmem [shape: bf16[2,16,64], index: 1, kind: output, shape index: {}]
  %s2 = sld [smem:[#allocation0]]
  $region37: #{gpt_forward.8} parent=0
    _
  %s4 = ssub.s32 1, %s2
  %s5 = scalar_select 0, %s4, %s2
  loop: start=0, step=1, limit=4
  $region2: #{gpt_forward.8} parent=0 // loop_pre_header
    _
  $region3: #{gpt_forward.8} parent=0 // loop_header
    %s7 = sphi 0, %s11
    %p8 = scmp.ge.s32.totalorder %s7, 4
    %s14 = sphi 0, %s26
    %s15 = sphi 0, %s22
    %s16 = sphi 0, %s14
    %s17 = sphi 0, %s15
    %s18 = sphi 0, %s16
    %s19 = sphi 0, %s17
    %s31 = sphi 0, %s33
    %s34 = sphi 0, %s31
    %s35 = sphi 0, %s34
    %s51 = sphi 0, %s35
    %s59 = sphi 0, %s61
    %s62 = sphi 0, %s59
    %s63 = sphi 0, %s62
    %s79 = sphi 0, %s63
  $region4: #{gpt_forward.8} parent=0 // loop_header_branch
    %10 = sbr.rel (%p8) target = $region8
  $region5: #{gpt_forward.8} parent=0 // loop_body
    %s12 = ssub.s32 %s7, 1
    %s13 = ssub.s32 %s7, 2
    %s20 = sadd.s32 1, %s15
    %p21 = scmp.ge.s32.totalorder %s20, 1
    %s22 = scalar_select %p21, 0, %s20
    %s23 = sadd.s32 1, %s14
    %s24 = scalar_select %p21, %s23, %s14
    %p25 = scmp.ge.s32.totalorder %s24, 2
    %s26 = scalar_select %p25, 0, %s24
    %s27 = ssub.s32 %s14, %s26
    %s28 = ssub.s32 %s15, %s22
    %s29 = sor.u32 %s27, %s28
    %p30 = scmp.eq.s32.totalorder %s29, 0
    %s32 = sadd.s32 %s31, 1
    %s33 = scalar_select %p30, %s31, %s32
    %p36 = pneg %p30
    %p37 = scmp.eq.s32.totalorder %s7, 1
    %p38 = por %p36, %p37
    %p39 = scmp.ne.s32.totalorder %s31, %s34
    %p40 = scmp.eq.s32.totalorder %s7, 0
    %p41 = por %p39, %p40
    %p42 = scmp.ne.s32.totalorder %s31, %s34
    %p43 = scmp.eq.s32.totalorder %s12, 1
    %p44 = por %p42, %p43
    %p45 = scmp.ne.s32.totalorder %s34, %s35
    %p46 = scmp.eq.s32.totalorder %s12, 0
    %p47 = por %p45, %p46
    %p48 = scmp.ne.s32.totalorder %s34, %s35
    %p49 = scmp.eq.s32.totalorder %s13, 1
    %p50 = por %p48, %p49
    %p52 = scmp.ne.s32.totalorder %s35, %s51
    %p53 = scmp.eq.s32.totalorder %s13, 0
    %p54 = por %p52, %p53
    %s55 = ssub.s32 %s14, %s26
    %s56 = ssub.s32 %s15, %s22
    %s57 = sor.u32 %s55, %s56
    %p58 = scmp.eq.s32.totalorder %s57, 0
    %s60 = sadd.s32 %s59, 1
    %s61 = scalar_select %p58, %s59, %s60
    %p64 = pneg %p58
    %p65 = scmp.eq.s32.totalorder %s7, 1
    %p66 = por %p64, %p65
    %p67 = scmp.ne.s32.totalorder %s59, %s62
    %p68 = scmp.eq.s32.totalorder %s7, 0
    %p69 = por %p67, %p68
    %p70 = scmp.ne.s32.totalorder %s59, %s62
    %p71 = scmp.eq.s32.totalorder %s12, 1
    %p72 = por %p70, %p71
    %p73 = scmp.ne.s32.totalorder %s62, %s63
    %p74 = scmp.eq.s32.totalorder %s12, 0
    %p75 = por %p73, %p74
    %p76 = scmp.ne.s32.totalorder %s62, %s63
    %p77 = scmp.eq.s32.totalorder %s13, 1
    %p78 = por %p76, %p77
    %p80 = scmp.ne.s32.totalorder %s63, %s79
    %p81 = scmp.eq.s32.totalorder %s13, 0
    %p82 = por %p80, %p81
    %p83 = scmp.le.s32.totalorder 1, %s7
    %p84 = scmp.lt.s32.totalorder %s7, 3
    %p85 = pnand %p83, %p84
    %p86 = pneg %p85
    // Predicated region
    $region9: #{gpt_forward.8} parent=5 // pred_check
      _
    $region10: #{gpt_forward.8} parent=5 // pred_check_branch
      %88 = sbr.rel (%p85) target = $region12
    $region11: #{gpt_forward.8} parent=5 // pred_region
      %s89 = ssub.s32 %s7, 1
    $region12: #{gpt_forward.8} parent=5 // pred_fallthru
      _
    %p90 = scmp.lt.s32.totalorder %s7, 2
    // Predicated region
    $region13: #{gpt_forward.8} parent=5 // pred_check
      %p91 = pneg %p90
    $region14: #{gpt_forward.8} parent=5 // pred_check_branch
      %93 = sbr.rel (%p91) target = $region16
    $region15: #{gpt_forward.8} parent=5 // pred_region
      // Predicated region
      $region17: #{gpt_forward.8} parent=15 // pred_check
        %p94 = pneg %p41
      $region18: #{gpt_forward.8} parent=15 // pred_check_branch
        %96 = sbr.rel (%p94) target = $region20
      $region19: #{gpt_forward.8} parent=15 // pred_region
        %s97 = smul.u32 2, %s15
        %p98 = scmp.lt.s32.totalorder %s14, 1
        %s99 = scalar_select %p98, %s14, 1
        %p100 = scmp.lt.s32.totalorder %s97, 1
        %s101 = scalar_select %p100, %s97, 1
        %s102 = smul.addr %s99, 4
        %s103 = sadd.s32 %s101, %s102
        %s104 = smul.addr %s103, 4
        %s105 = scalar_lea.vmem %s0, %s104
        %s106 = smul.u32 2, %s15
      $region20: #{gpt_forward.8} parent=15 // pred_fallthru
        _
    $region16: #{gpt_forward.8} parent=5 // pred_fallthru
      _
    %p107 = scmp.le.s32.totalorder 1, %s7
    %p108 = scmp.lt.s32.totalorder %s7, 3
    %p109 = pnand %p107, %p108
    %p110 = pneg %p109
    // Predicated region
    $region21: #{gpt_forward.8} parent=5 // pred_check
      _
    $region22: #{gpt_forward.8} parent=5 // pred_check_branch
      %112 = sbr.rel (%p109) target = $region24
    $region23: #{gpt_forward.8} parent=5 // pred_region
      %s113 = ssub.s32 %s7, 1
      %s114 = smul.u32 2, %s17
      %p115 = scmp.lt.s32.totalorder %s16, 1
      %s116 = scalar_select %p115, %s16, 1
      %p117 = scmp.lt.s32.totalorder %s114, 1
      %s118 = scalar_select %p117, %s114, 1
      %s119 = smul.addr %s116, 4
      %s120 = sadd.s32 %s118, %s119
      %s121 = smul.addr %s120, 4
      %s122 = scalar_lea.vmem %s0, %s121
      %p123 = pneg %p47
      %p124 = pneg %p44
      %p125 = pneg %p75
      %p126 = pneg %p72
      %p127 = scmp.lt.s32.totalorder %s16, 1
      %s128 = scalar_select %p127, %s16, 1
      %p129 = scmp.lt.s32.totalorder %s17, 0
      %s130 = scalar_select %p129, %s17, 0
      %s131 = smul.addr %s128, 2
      %s132 = sadd.s32 %s130, %s131
      %s133 = smul.addr %s132, 4
      %s134 = scalar_lea.vmem %s1, %s133
      %s135 = smul.u32 2, %s17
      %p136 = scmp.lt.s32.totalorder %s16, 1
      %s137 = scalar_select %p136, %s16, 1
      %p138 = scmp.lt.s32.totalorder %s135, 1
      %s139 = scalar_select %p138, %s135, 1
      %s140 = smul.addr %s137, 4
      %s141 = sadd.s32 %s139, %s140
      %s142 = smul.addr %s141, 4
      %s143 = scalar_lea.vmem %s0, %s142
      %s144 = smul.u32 2, %s17
      %p145 = scmp.lt.s32.totalorder %s16, 1
      %s146 = scalar_select %p145, %s16, 1
      %p147 = scmp.lt.s32.totalorder %s17, 0
      %s148 = scalar_select %p147, %s17, 0
      %s149 = smul.addr %s146, 2
      %s150 = sadd.s32 %s148, %s149
      %s151 = smul.addr %s150, 4
      %s152 = scalar_lea.vmem %s1, %s151
      %v154 = vld [vmem:[%s143] sm:$0xff]
      %v155 = vld [vmem:[%s143 + $0x8] sm:$0xff]
      %v156 = vlaneseq
      %v157 = vshrl.u32 %v156, 7
      %v158 = vadd.s32 %v157, 8
      %v159 = vlaneseq
      %v160 = vand.u32 %v159, 127
      %vm161 = vcmp.le.s32.totalorder %v160, %v157
      %vm162 = vcmp.le.s32.totalorder %v160, %v158
      %v163 = vunpack.c.l.bf16 %v154
      %v164 = vunpack.c.l.bf16 %v155
      %v165 = vmul.f32 %v163, 0.25
      %v166 = vmul.f32 %v164, 0.25
      %v167 = vpack.c.bf16 %v166, %v165
      %v170 = vunpack.c.l.b16 %v154
      %v171 = vunpack.c.l.b16 %v155
      %v172 = vpack.c.b16 %v171, %v170
      %173 = vrot.lane.b32.xlu0 %v172, 64
      %v174 = vpop.permute.xlu0 %173
      %vm175 = vcmask 130048
      %v177 = vsel %vm175, %v167, 0
      %v180 = vsel %vm175, %v174, 0
      %182 = vmatprep.subr.bf16.mxu0 0
      %183 = vmatpush1.bf16.xpose.msra.mxu0 %v180
      %184 = vmatprep.subr.bf16.mxu0 0
      %185 = vmatpush1.bf16.xpose.msra.mxu0 0
      %186 = vmatprep.subr.bf16.mxu0 0
      %187 = vmatpush1.bf16.xpose.msra.mxu0 0
      %188 = vmatprep.subr.bf16.mxu0 0
      %189 = vmatpush1.bf16.xpose.msra.mxu0 0
      %190 = vmatprep.subr.bf16.mxu0 0
      %191 = vmatpush1.bf16.xpose.msra.mxu0 0
      %192 = vmatprep.subr.bf16.mxu0 0
      %193 = vmatpush1.bf16.xpose.msra.mxu0 0
      %194 = vmatprep.subr.bf16.mxu0 0
      %195 = vmatpush1.bf16.xpose.msra.mxu0 0
      %196 = vmatprep.subr.bf16.mxu0 0
      %197 = vmatpush1.bf16.xpose.msra.mxu0 0
      %198 = vmatprep.subr.bf16.mxu0 0
      %199 = vmatpush1.bf16.xpose.msra.mxu0 0
      %200 = vmatprep.subr.bf16.mxu0 0
      %201 = vmatpush1.bf16.xpose.msra.mxu0 0
      %202 = vmatprep.subr.bf16.mxu0 0
      %203 = vmatpush1.bf16.xpose.msra.mxu0 0
      %204 = vmatprep.subr.bf16.mxu0 0
      %205 = vmatpush1.bf16.xpose.msra.mxu0 0
      %206 = vmatprep.subr.bf16.mxu0 0
      %207 = vmatpush1.bf16.xpose.msra.mxu0 0
      %208 = vmatprep.subr.bf16.mxu0 0
      %209 = vmatpush1.bf16.xpose.msra.mxu0 0
      %210 = vmatprep.subr.bf16.mxu0 0
      %211 = vmatpush1.bf16.xpose.msra.mxu0 0
      %212 = vmatprep.subr.bf16.mxu0 0
      %213 = vmatpush1.bf16.xpose.msra.mxu0 0
      %214 = vmatprep.mubr.bf16.mxu0 0
      %215 = vmatmul.mubr.bf16.gmra.mrb[0].mxu0 %v177
      %v216 = vpop.f32.mrb[0].mxu0
      %v217 = vadd.f32 0.0, %v216
      %v218 = vpop.f32.mrb[0].mxu0
      %v219 = vpop.f32.mrb[0].mxu0
      %v220 = vadd.f32 0.0, %v219
      %v221 = vpop.f32.mrb[0].mxu0
      %222 = vdwg.mxu0
      %v223 = vsel %vm161, %v217, -1e+30
      %v224 = vsel %vm162, %v220, -1e+30
      %v225 = vsel %vm175, %v223, -inf
      %226 = vmax.xlane.f32.xlu0 %v225
      %v227 = vpop.xlane.xlu0 %226
      %v228 = vsel %vm175, %v224, -inf
      %229 = vmax.xlane.f32.xlu0 %v228
      %v230 = vpop.xlane.xlu0 %229
      %v231 = vsub.f32 %v223, %v227
      %v232 = vsub.f32 %v224, %v230
      %v233 = vmul.f32 %v231, 1.442695
      %v234 = vpow.pop %v233
      %v235 = vmul.f32 %v232, 1.442695
      %v236 = vpow.pop %v235
      %v237 = vsel %vm175, %v234, 0.0
      %238 = vadd.xlane.f32.xlu0 %v237
      %v239 = vpop.xlane.xlu0 %238
      %v240 = vsel %vm175, %v236, 0.0
      %241 = vadd.xlane.f32.xlu0 %v240
      %v242 = vpop.xlane.xlu0 %241
      %v243 = vrcp.pop %v239
      %v244 = vrcp.pop %v242
      %v245 = vmul.f32 %v234, %v243
      %v246 = vmul.f32 %v236, %v244
      %v247 = vpack.c.bf16 %v246, %v245
      %v248 = vunpack.c.h.b16 %v154
      %v249 = vunpack.c.h.b16 %v155
      %v250 = vpack.c.b16 %v249, %v248
      %v253 = vsel %vm175, %v247, 0
      %255 = vmatprep.subr.bf16.mxu0 0
      %256 = vmatpush1.bf16.msra.mxu0 %v250
      %257 = vmatprep.subr.bf16.mxu0 0
      %258 = vmatpush1.bf16.msra.mxu0 0
      %259 = vmatprep.subr.bf16.mxu0 0
      %260 = vmatpush1.bf16.msra.mxu0 0
      %261 = vmatprep.subr.bf16.mxu0 0
      %262 = vmatpush1.bf16.msra.mxu0 0
      %263 = vmatprep.subr.bf16.mxu0 0
      %264 = vmatpush1.bf16.msra.mxu0 0
      %265 = vmatprep.subr.bf16.mxu0 0
      %266 = vmatpush1.bf16.msra.mxu0 0
      %267 = vmatprep.subr.bf16.mxu0 0
      %268 = vmatpush1.bf16.msra.mxu0 0
      %269 = vmatprep.subr.bf16.mxu0 0
      %270 = vmatpush1.bf16.msra.mxu0 0
      %271 = vmatprep.subr.bf16.mxu0 0
      %272 = vmatpush1.bf16.msra.mxu0 0
      %273 = vmatprep.subr.bf16.mxu0 0
      %274 = vmatpush1.bf16.msra.mxu0 0
      %275 = vmatprep.subr.bf16.mxu0 0
      %276 = vmatpush1.bf16.msra.mxu0 0
      %277 = vmatprep.subr.bf16.mxu0 0
      %278 = vmatpush1.bf16.msra.mxu0 0
      %279 = vmatprep.subr.bf16.mxu0 0
      %280 = vmatpush1.bf16.msra.mxu0 0
      %281 = vmatprep.subr.bf16.mxu0 0
      %282 = vmatpush1.bf16.msra.mxu0 0
      %283 = vmatprep.subr.bf16.mxu0 0
      %284 = vmatpush1.bf16.msra.mxu0 0
      %285 = vmatprep.subr.bf16.mxu0 0
      %286 = vmatpush1.bf16.msra.mxu0 0
      %287 = vmatprep.mubr.bf16.mxu0 0
      %288 = vmatmul.mubr.bf16.gmra.mrb[0].mxu0 %v253
      %v289 = vpop.f32.mrb[0].mxu0
      %v290 = vadd.f32 0.0, %v289
      %v291 = vpop.f32.mrb[0].mxu0
      %v292 = vpop.f32.mrb[0].mxu0
      %v293 = vadd.f32 0.0, %v292
      %v294 = vpop.f32.mrb[0].mxu0
      %295 = vdwg.mxu0
      %v296 = vpack.c.bf16 %v293, %v290
      %v298 = vunpack.c.l.b16 %v296
      %v299 = vunpack.c.h.b16 %v296
      %v300 = vpack.c.b16 %v298, %v298
      %v301 = vpack.c.b16 %v299, %v299
      %vm304 = vcmask 125952
      %305 = vst.msk [vmem:[%s152] sm:$0xf] %vm304, %v300
      %306 = vst.msk [vmem:[%s152 + $0x4] sm:$0xf] %vm304, %v301
      %308 = vrot.lane.b32.xlu0 %v167, 112
      %v309 = vpop.permute.xlu0 %308
      %310 = vrot.lane.b32.xlu0 %v172, 48
      %v311 = vpop.permute.xlu0 %310
      %v313 = vsel %vm175, %v309, 0
      %v316 = vsel %vm175, %v311, 0
      %318 = vmatprep.subr.bf16.mxu0 0
      %319 = vmatpush1.bf16.xpose.msra.mxu0 %v316
      %320 = vmatprep.subr.bf16.mxu0 0
      %321 = vmatpush1.bf16.xpose.msra.mxu0 0
      %322 = vmatprep.subr.bf16.mxu0 0
      %323 = vmatpush1.bf16.xpose.msra.mxu0 0
      %324 = vmatprep.subr.bf16.mxu0 0
      %325 = vmatpush1.bf16.xpose.msra.mxu0 0
      %326 = vmatprep.subr.bf16.mxu0 0
      %327 = vmatpush1.bf16.xpose.msra.mxu0 0
      %328 = vmatprep.subr.bf16.mxu0 0
      %329 = vmatpush1.bf16.xpose.msra.mxu0 0
      %330 = vmatprep.subr.bf16.mxu0 0
      %331 = vmatpush1.bf16.xpose.msra.mxu0 0
      %332 = vmatprep.subr.bf16.mxu0 0
      %333 = vmatpush1.bf16.xpose.msra.mxu0 0
      %334 = vmatprep.subr.bf16.mxu0 0
      %335 = vmatpush1.bf16.xpose.msra.mxu0 0
      %336 = vmatprep.subr.bf16.mxu0 0
      %337 = vmatpush1.bf16.xpose.msra.mxu0 0
      %338 = vmatprep.subr.bf16.mxu0 0
      %339 = vmatpush1.bf16.xpose.msra.mxu0 0
      %340 = vmatprep.subr.bf16.mxu0 0
      %341 = vmatpush1.bf16.xpose.msra.mxu0 0
      %342 = vmatprep.subr.bf16.mxu0 0
      %343 = vmatpush1.bf16.xpose.msra.mxu0 0
      %344 = vmatprep.subr.bf16.mxu0 0
      %345 = vmatpush1.bf16.xpose.msra.mxu0 0
      %346 = vmatprep.subr.bf16.mxu0 0
      %347 = vmatpush1.bf16.xpose.msra.mxu0 0
      %348 = vmatprep.subr.bf16.mxu0 0
      %349 = vmatpush1.bf16.xpose.msra.mxu0 0
      %350 = vmatprep.mubr.bf16.mxu0 0
      %351 = vmatmul.mubr.bf16.gmra.mrb[0].mxu0 %v313
      %v352 = vpop.f32.mrb[0].mxu0
      %v353 = vadd.f32 0.0, %v352
      %v354 = vpop.f32.mrb[0].mxu0
      %v355 = vpop.f32.mrb[0].mxu0
      %v356 = vadd.f32 0.0, %v355
      %v357 = vpop.f32.mrb[0].mxu0
      %358 = vdwg.mxu0
      %v359 = vsel %vm161, %v353, -1e+30
      %v360 = vsel %vm162, %v356, -1e+30
      %v361 = vsel %vm175, %v359, -inf
      %362 = vmax.xlane.f32.xlu0 %v361
      %v363 = vpop.xlane.xlu0 %362
      %v364 = vsel %vm175, %v360, -inf
      %365 = vmax.xlane.f32.xlu0 %v364
      %v366 = vpop.xlane.xlu0 %365
      %v367 = vsub.f32 %v359, %v363
      %v368 = vsub.f32 %v360, %v366
      %v369 = vmul.f32 %v367, 1.442695
      %v370 = vpow.pop %v369
      %v371 = vmul.f32 %v368, 1.442695
      %v372 = vpow.pop %v371
      %v373 = vsel %vm175, %v370, 0.0
      %374 = vadd.xlane.f32.xlu0 %v373
      %v375 = vpop.xlane.xlu0 %374
      %v376 = vsel %vm175, %v372, 0.0
      %377 = vadd.xlane.f32.xlu0 %v376
      %v378 = vpop.xlane.xlu0 %377
      %v379 = vrcp.pop %v375
      %v380 = vrcp.pop %v378
      %v381 = vmul.f32 %v370, %v379
      %v382 = vmul.f32 %v372, %v380
      %v383 = vpack.c.bf16 %v382, %v381
      %384 = vrot.lane.b32.xlu0 %v250, 112
      %v385 = vpop.permute.xlu0 %384
      %v388 = vsel %vm175, %v383, 0
      %390 = vmatprep.subr.bf16.mxu0 0
      %391 = vmatpush1.bf16.msra.mxu0 %v385
      %392 = vmatprep.subr.bf16.mxu0 0
      %393 = vmatpush1.bf16.msra.mxu0 0
      %394 = vmatprep.subr.bf16.mxu0 0
      %395 = vmatpush1.bf16.msra.mxu0 0
      %396 = vmatprep.subr.bf16.mxu0 0
      %397 = vmatpush1.bf16.msra.mxu0 0
      %398 = vmatprep.subr.bf16.mxu0 0
      %399 = vmatpush1.bf16.msra.mxu0 0
      %400 = vmatprep.subr.bf16.mxu0 0
      %401 = vmatpush1.bf16.msra.mxu0 0
      %402 = vmatprep.subr.bf16.mxu0 0
      %403 = vmatpush1.bf16.msra.mxu0 0
      %404 = vmatprep.subr.bf16.mxu0 0
      %405 = vmatpush1.bf16.msra.mxu0 0
      %406 = vmatprep.subr.bf16.mxu0 0
      %407 = vmatpush1.bf16.msra.mxu0 0
      %408 = vmatprep.subr.bf16.mxu0 0
      %409 = vmatpush1.bf16.msra.mxu0 0
      %410 = vmatprep.subr.bf16.mxu0 0
      %411 = vmatpush1.bf16.msra.mxu0 0
      %412 = vmatprep.subr.bf16.mxu0 0
      %413 = vmatpush1.bf16.msra.mxu0 0
      %414 = vmatprep.subr.bf16.mxu0 0
      %415 = vmatpush1.bf16.msra.mxu0 0
      %416 = vmatprep.subr.bf16.mxu0 0
      %417 = vmatpush1.bf16.msra.mxu0 0
      %418 = vmatprep.subr.bf16.mxu0 0
      %419 = vmatpush1.bf16.msra.mxu0 0
      %420 = vmatprep.subr.bf16.mxu0 0
      %421 = vmatpush1.bf16.msra.mxu0 0
      %422 = vmatprep.mubr.bf16.mxu0 0
      %423 = vmatmul.mubr.bf16.gmra.mrb[0].mxu0 %v388
      %v424 = vpop.f32.mrb[0].mxu0
      %v425 = vadd.f32 0.0, %v424
      %v426 = vpop.f32.mrb[0].mxu0
      %v427 = vpop.f32.mrb[0].mxu0
      %v428 = vadd.f32 0.0, %v427
      %v429 = vpop.f32.mrb[0].mxu0
      %430 = vdwg.mxu0
      %v431 = vpack.c.bf16 %v428, %v425
      %v433 = vunpack.c.l.b16 %v431
      %v434 = vunpack.c.h.b16 %v431
      %v435 = vpack.c.b16 %v433, %v433
      %v436 = vpack.c.b16 %v434, %v434
      %437 = vrot.lane.b32.xlu0 %v435, 16
      %v438 = vpop.permute.xlu0 %437
      %439 = vrot.lane.b32.xlu0 %v436, 16
      %v440 = vpop.permute.xlu0 %439
      %vm443 = vcmask 257152
      %444 = vst.msk [vmem:[%s152] sm:$0xf] %vm443, %v438
      %445 = vst.msk [vmem:[%s152 + $0x4] sm:$0xf] %vm443, %v440
      %446 = vrot.lane.b32.xlu0 %v167, 96
      %v447 = vpop.permute.xlu0 %446
      %448 = vrot.lane.b32.xlu0 %v172, 32
      %v449 = vpop.permute.xlu0 %448
      %v451 = vsel %vm175, %v447, 0
      %v454 = vsel %vm175, %v449, 0
      %456 = vmatprep.subr.bf16.mxu0 0
      %457 = vmatpush1.bf16.xpose.msra.mxu0 %v454
      %458 = vmatprep.subr.bf16.mxu0 0
      %459 = vmatpush1.bf16.xpose.msra.mxu0 0
      %460 = vmatprep.subr.bf16.mxu0 0
      %461 = vmatpush1.bf16.xpose.msra.mxu0 0
      %462 = vmatprep.subr.bf16.mxu0 0
      %463 = vmatpush1.bf16.xpose.msra.mxu0 0
      %464 = vmatprep.subr.bf16.mxu0 0
      %465 = vmatpush1.bf16.xpose.msra.mxu0 0
      %466 = vmatprep.subr.bf16.mxu0 0
      %467 = vmatpush1.bf16.xpose.msra.mxu0 0
      %468 = vmatprep.subr.bf16.mxu0 0
      %469 = vmatpush1.bf16.xpose.msra.mxu0 0
      %470 = vmatprep.subr.bf16.mxu0 0
      %471 = vmatpush1.bf16.xpose.msra.mxu0 0
      %472 = vmatprep.subr.bf16.mxu0 0
      %473 = vmatpush1.bf16.xpose.msra.mxu0 0
      %474 = vmatprep.subr.bf16.mxu0 0
      %475 = vmatpush1.bf16.xpose.msra.mxu0 0
      %476 = vmatprep.subr.bf16.mxu0 0
      %477 = vmatpush1.bf16.xpose.msra.mxu0 0
      %478 = vmatprep.subr.bf16.mxu0 0
      %479 = vmatpush1.bf16.xpose.msra.mxu0 0
      %480 = vmatprep.subr.bf16.mxu0 0
      %481 = vmatpush1.bf16.xpose.msra.mxu0 0
      %482 = vmatprep.subr.bf16.mxu0 0
      %483 = vmatpush1.bf16.xpose.msra.mxu0 0
      %484 = vmatprep.subr.bf16.mxu0 0
      %485 = vmatpush1.bf16.xpose.msra.mxu0 0
      %486 = vmatprep.subr.bf16.mxu0 0
      %487 = vmatpush1.bf16.xpose.msra.mxu0 0
      %488 = vmatprep.mubr.bf16.mxu0 0
      %489 = vmatmul.mubr.bf16.gmra.mrb[0].mxu0 %v451
      %v490 = vpop.f32.mrb[0].mxu0
      %v491 = vadd.f32 0.0, %v490
      %v492 = vpop.f32.mrb[0].mxu0
      %v493 = vpop.f32.mrb[0].mxu0
      %v494 = vadd.f32 0.0, %v493
      %v495 = vpop.f32.mrb[0].mxu0
      %496 = vdwg.mxu0
      %v497 = vsel %vm161, %v491, -1e+30
      %v498 = vsel %vm162, %v494, -1e+30
      %v499 = vsel %vm175, %v497, -inf
      %500 = vmax.xlane.f32.xlu0 %v499
      %v501 = vpop.xlane.xlu0 %500
      %v502 = vsel %vm175, %v498, -inf
      %503 = vmax.xlane.f32.xlu0 %v502
      %v504 = vpop.xlane.xlu0 %503
      %v505 = vsub.f32 %v497, %v501
      %v506 = vsub.f32 %v498, %v504
      %v507 = vmul.f32 %v505, 1.442695
      %v508 = vpow.pop %v507
      %v509 = vmul.f32 %v506, 1.442695
      %v510 = vpow.pop %v509
      %v511 = vsel %vm175, %v508, 0.0
      %512 = vadd.xlane.f32.xlu0 %v511
      %v513 = vpop.xlane.xlu0 %512
      %v514 = vsel %vm175, %v510, 0.0
      %515 = vadd.xlane.f32.xlu0 %v514
      %v516 = vpop.xlane.xlu0 %515
      %v517 = vrcp.pop %v513
      %v518 = vrcp.pop %v516
      %v519 = vmul.f32 %v508, %v517
      %v520 = vmul.f32 %v510, %v518
      %v521 = vpack.c.bf16 %v520, %v519
      %522 = vrot.lane.b32.xlu0 %v250, 96
      %v523 = vpop.permute.xlu0 %522
      %v526 = vsel %vm175, %v521, 0
      %528 = vmatprep.subr.bf16.mxu0 0
      %529 = vmatpush1.bf16.msra.mxu0 %v523
      %530 = vmatprep.subr.bf16.mxu0 0
      %531 = vmatpush1.bf16.msra.mxu0 0
      %532 = vmatprep.subr.bf16.mxu0 0
      %533 = vmatpush1.bf16.msra.mxu0 0
      %534 = vmatprep.subr.bf16.mxu0 0
      %535 = vmatpush1.bf16.msra.mxu0 0
      %536 = vmatprep.subr.bf16.mxu0 0
      %537 = vmatpush1.bf16.msra.mxu0 0
      %538 = vmatprep.subr.bf16.mxu0 0
      %539 = vmatpush1.bf16.msra.mxu0 0
      %540 = vmatprep.subr.bf16.mxu0 0
      %541 = vmatpush1.bf16.msra.mxu0 0
      %542 = vmatprep.subr.bf16.mxu0 0
      %543 = vmatpush1.bf16.msra.mxu0 0
      %544 = vmatprep.subr.bf16.mxu0 0
      %545 = vmatpush1.bf16.msra.mxu0 0
      %546 = vmatprep.subr.bf16.mxu0 0
      %547 = vmatpush1.bf16.msra.mxu0 0
      %548 = vmatprep.subr.bf16.mxu0 0
      %549 = vmatpush1.bf16.msra.mxu0 0
      %550 = vmatprep.subr.bf16.mxu0 0
      %551 = vmatpush1.bf16.msra.mxu0 0
      %552 = vmatprep.subr.bf16.mxu0 0
      %553 = vmatpush1.bf16.msra.mxu0 0
      %554 = vmatprep.subr.bf16.mxu0 0
      %555 = vmatpush1.bf16.msra.mxu0 0
      %556 = vmatprep.subr.bf16.mxu0 0
      %557 = vmatpush1.bf16.msra.mxu0 0
      %558 = vmatprep.subr.bf16.mxu0 0
      %559 = vmatpush1.bf16.msra.mxu0 0
      %560 = vmatprep.mubr.bf16.mxu0 0
      %561 = vmatmul.mubr.bf16.gmra.mrb[0].mxu0 %v526
      %v562 = vpop.f32.mrb[0].mxu0
      %v563 = vadd.f32 0.0, %v562
      %v564 = vpop.f32.mrb[0].mxu0
      %v565 = vpop.f32.mrb[0].mxu0
      %v566 = vadd.f32 0.0, %v565
      %v567 = vpop.f32.mrb[0].mxu0
      %568 = vdwg.mxu0
      %v569 = vpack.c.bf16 %v566, %v563
      %v571 = vunpack.c.l.b16 %v569
      %v572 = vunpack.c.h.b16 %v569
      %v573 = vpack.c.b16 %v571, %v571
      %v574 = vpack.c.b16 %v572, %v572
      %575 = vrot.lane.b32.xlu0 %v573, 32
      %v576 = vpop.permute.xlu0 %575
      %577 = vrot.lane.b32.xlu0 %v574, 32
      %v578 = vpop.permute.xlu0 %577
      %vm581 = vcmask 388352
      %582 = vst.msk [vmem:[%s152] sm:$0xf] %vm581, %v576
      %583 = vst.msk [vmem:[%s152 + $0x4] sm:$0xf] %vm581, %v578
      %584 = vrot.lane.b32.xlu0 %v167, 80
      %v585 = vpop.permute.xlu0 %584
      %586 = vrot.lane.b32.xlu0 %v172, 16
      %v587 = vpop.permute.xlu0 %586
      %v589 = vsel %vm175, %v585, 0
      %v592 = vsel %vm175, %v587, 0
      %594 = vmatprep.subr.bf16.mxu0 0
      %595 = vmatpush1.bf16.xpose.msra.mxu0 %v592
      %596 = vmatprep.subr.bf16.mxu0 0
      %597 = vmatpush1.bf16.xpose.msra.mxu0 0
      %598 = vmatprep.subr.bf16.mxu0 0
      %599 = vmatpush1.bf16.xpose.msra.mxu0 0
      %600 = vmatprep.subr.bf16.mxu0 0
      %601 = vmatpush1.bf16.xpose.msra.mxu0 0
      %602 = vmatprep.subr.bf16.mxu0 0
      %603 = vmatpush1.bf16.xpose.msra.mxu0 0
      %604 = vmatprep.subr.bf16.mxu0 0
      %605 = vmatpush1.bf16.xpose.msra.mxu0 0
      %606 = vmatprep.subr.bf16.mxu0 0
      %607 = vmatpush1.bf16.xpose.msra.mxu0 0
      %608 = vmatprep.subr.bf16.mxu0 0
      %609 = vmatpush1.bf16.xpose.msra.mxu0 0
      %610 = vmatprep.subr.bf16.mxu0 0
      %611 = vmatpush1.bf16.xpose.msra.mxu0 0
      %612 = vmatprep.subr.bf16.mxu0 0
      %613 = vmatpush1.bf16.xpose.msra.mxu0 0
      %614 = vmatprep.subr.bf16.mxu0 0
      %615 = vmatpush1.bf16.xpose.msra.mxu0 0
      %616 = vmatprep.subr.bf16.mxu0 0
      %617 = vmatpush1.bf16.xpose.msra.mxu0 0
      %618 = vmatprep.subr.bf16.mxu0 0
      %619 = vmatpush1.bf16.xpose.msra.mxu0 0
      %620 = vmatprep.subr.bf16.mxu0 0
      %621 = vmatpush1.bf16.xpose.msra.mxu0 0
      %622 = vmatprep.subr.bf16.mxu0 0
      %623 = vmatpush1.bf16.xpose.msra.mxu0 0
      %624 = vmatprep.subr.bf16.mxu0 0
      %625 = vmatpush1.bf16.xpose.msra.mxu0 0
      %626 = vmatprep.mubr.bf16.mxu0 0
      %627 = vmatmul.mubr.bf16.gmra.mrb[0].mxu0 %v589
      %v628 = vpop.f32.mrb[0].mxu0
      %v629 = vadd.f32 0.0, %v628
      %v630 = vpop.f32.mrb[0].mxu0
      %v631 = vpop.f32.mrb[0].mxu0
      %v632 = vadd.f32 0.0, %v631
      %v633 = vpop.f32.mrb[0].mxu0
      %634 = vdwg.mxu0
      %v635 = vsel %vm161, %v629, -1e+30
      %v636 = vsel %vm162, %v632, -1e+30
      %v637 = vsel %vm175, %v635, -inf
      %638 = vmax.xlane.f32.xlu0 %v637
      %v639 = vpop.xlane.xlu0 %638
      %v640 = vsel %vm175, %v636, -inf
      %641 = vmax.xlane.f32.xlu0 %v640
      %v642 = vpop.xlane.xlu0 %641
      %v643 = vsub.f32 %v635, %v639
      %v644 = vsub.f32 %v636, %v642
      %v645 = vmul.f32 %v643, 1.442695
      %v646 = vpow.pop %v645
      %v647 = vmul.f32 %v644, 1.442695
      %v648 = vpow.pop %v647
      %v649 = vsel %vm175, %v646, 0.0
      %650 = vadd.xlane.f32.xlu0 %v649
      %v651 = vpop.xlane.xlu0 %650
      %v652 = vsel %vm175, %v648, 0.0
      %653 = vadd.xlane.f32.xlu0 %v652
      %v654 = vpop.xlane.xlu0 %653
      %v655 = vrcp.pop %v651
      %v656 = vrcp.pop %v654
      %v657 = vmul.f32 %v646, %v655
      %v658 = vmul.f32 %v648, %v656
      %v659 = vpack.c.bf16 %v658, %v657
      %660 = vrot.lane.b32.xlu0 %v250, 80
      %v661 = vpop.permute.xlu0 %660
      %v664 = vsel %vm175, %v659, 0
      %666 = vmatprep.subr.bf16.mxu0 0
      %667 = vmatpush1.bf16.msra.mxu0 %v661
      %668 = vmatprep.subr.bf16.mxu0 0
      %669 = vmatpush1.bf16.msra.mxu0 0
      %670 = vmatprep.subr.bf16.mxu0 0
      %671 = vmatpush1.bf16.msra.mxu0 0
      %672 = vmatprep.subr.bf16.mxu0 0
      %673 = vmatpush1.bf16.msra.mxu0 0
      %674 = vmatprep.subr.bf16.mxu0 0
      %675 = vmatpush1.bf16.msra.mxu0 0
      %676 = vmatprep.subr.bf16.mxu0 0
      %677 = vmatpush1.bf16.msra.mxu0 0
      %678 = vmatprep.subr.bf16.mxu0 0
      %679 = vmatpush1.bf16.msra.mxu0 0
      %680 = vmatprep.subr.bf16.mxu0 0
      %681 = vmatpush1.bf16.msra.mxu0 0
      %682 = vmatprep.subr.bf16.mxu0 0
      %683 = vmatpush1.bf16.msra.mxu0 0
      %684 = vmatprep.subr.bf16.mxu0 0
      %685 = vmatpush1.bf16.msra.mxu0 0
      %686 = vmatprep.subr.bf16.mxu0 0
      %687 = vmatpush1.bf16.msra.mxu0 0
      %688 = vmatprep.subr.bf16.mxu0 0
      %689 = vmatpush1.bf16.msra.mxu0 0
      %690 = vmatprep.subr.bf16.mxu0 0
      %691 = vmatpush1.bf16.msra.mxu0 0
      %692 = vmatprep.subr.bf16.mxu0 0
      %693 = vmatpush1.bf16.msra.mxu0 0
      %694 = vmatprep.subr.bf16.mxu0 0
      %695 = vmatpush1.bf16.msra.mxu0 0
      %696 = vmatprep.subr.bf16.mxu0 0
      %697 = vmatpush1.bf16.msra.mxu0 0
      %698 = vmatprep.mubr.bf16.mxu0 0
      %699 = vmatmul.mubr.bf16.gmra.mrb[0].mxu0 %v664
      %v700 = vpop.f32.mrb[0].mxu0
      %v701 = vadd.f32 0.0, %v700
      %v702 = vpop.f32.mrb[0].mxu0
      %v703 = vpop.f32.mrb[0].mxu0
      %v704 = vadd.f32 0.0, %v703
      %v705 = vpop.f32.mrb[0].mxu0
      %706 = vdwg.mxu0
      %v707 = vpack.c.bf16 %v704, %v701
      %v709 = vunpack.c.l.b16 %v707
      %v710 = vunpack.c.h.b16 %v707
      %v711 = vpack.c.b16 %v709, %v709
      %v712 = vpack.c.b16 %v710, %v710
      %713 = vrot.lane.b32.xlu0 %v711, 48
      %v714 = vpop.permute.xlu0 %713
      %715 = vrot.lane.b32.xlu0 %v712, 48
      %v716 = vpop.permute.xlu0 %715
      %vm719 = vcmask 519552
      %720 = vst.msk [vmem:[%s152] sm:$0xf] %vm719, %v714
      %721 = vst.msk [vmem:[%s152 + $0x4] sm:$0xf] %vm719, %v716
      %p722 = scmp.lt.s32.totalorder %s16, 1
      %s723 = scalar_select %p722, %s16, 1
      %p724 = scmp.lt.s32.totalorder %s17, 0
      %s725 = scalar_select %p724, %s17, 0
      %s726 = smul.addr %s723, 2
      %s727 = sadd.s32 %s725, %s726
      %s728 = smul.addr %s727, 4
      %s729 = scalar_lea.vmem %s1, %s728
      // Predicated region
      $region25: #{gpt_forward.8} parent=23 // pred_check
        %p730 = pneg %p72
      $region26: #{gpt_forward.8} parent=23 // pred_check_branch
        %732 = sbr.rel (%p730) target = $region28
      $region27: #{gpt_forward.8} parent=23 // pred_region
        _
      $region28: #{gpt_forward.8} parent=23 // pred_fallthru
        _
    $region24: #{gpt_forward.8} parent=5 // pred_fallthru
      _
    %p733 = scmp.le.s32.totalorder 2, %s7
    // Predicated region
    $region29: #{gpt_forward.8} parent=5 // pred_check
      %p734 = pneg %p733
    $region30: #{gpt_forward.8} parent=5 // pred_check_branch
      %736 = sbr.rel (%p734) target = $region32
    $region31: #{gpt_forward.8} parent=5 // pred_region
      %s737 = ssub.s32 %s7, 2
      // Predicated region
      $region33: #{gpt_forward.8} parent=31 // pred_check
        %p738 = pneg %p78
      $region34: #{gpt_forward.8} parent=31 // pred_check_branch
        %740 = sbr.rel (%p738) target = $region36
      $region35: #{gpt_forward.8} parent=31 // pred_region
        %p741 = scmp.lt.s32.totalorder %s18, 1
        %s742 = scalar_select %p741, %s18, 1
        %p743 = scmp.lt.s32.totalorder %s19, 0
        %s744 = scalar_select %p743, %s19, 0
        %s745 = smul.addr %s742, 2
        %s746 = sadd.s32 %s744, %s745
        %s747 = smul.addr %s746, 4
        %s748 = scalar_lea.vmem %s1, %s747
      $region36: #{gpt_forward.8} parent=31 // pred_fallthru
        _
    $region32: #{gpt_forward.8} parent=5 // pred_fallthru
      _
  $region6: #{gpt_forward.8} parent=0 // loop_footer
    %s11 = sadd.s32 1, %s7
  $region7: #{gpt_forward.8} parent=0 // loop_footer_branch
    %6 = sbr.rel target = $region3
  $region8: #{gpt_forward.8} parent=0 // loop_exit
    _

// kernel: gpt_forward.9
$region0: #{gpt_forward.9}
  #allocation0 [shape = 'u32[]', space=smem, size = 0x4, offset = 0x4, fixed_abs, tag = 'smem constant byte address 0x4 - core index']
  #allocation1 [shape = 'u32[144,128]{1,0:T(1,128)}', space=vmem, size = 0x12000, scoped, tag = 'internal scratch']
  #allocation2 [shape = 'bf16[32,64]{1,0:T(16,128)(2,1)}', space=vmem, size = 0x2000, scoped, tag = 'scratch operand']
  #allocation3 [shape = 'f32[32,64]{1,0:T(8,128)}', space=vmem, size = 0x4000, scoped, tag = 'scratch operand']
  %s0 = inlined_call_operand.vmem [shape: bf16[32,64], index: 0, kind: input, shape index: {}]
  %s1 = inlined_call_operand.vmem [shape: bf16[64,64], index: 1, kind: input, shape index: {}]
  %s2 = inlined_call_operand.vmem [shape: f32[1,64], index: 2, kind: input, shape index: {}]
  %s3 = inlined_call_operand.vmem [shape: f32[32,64], index: 3, kind: input, shape index: {}]
  %s4 = inlined_call_operand.vmem [shape: f32[1,64], index: 4, kind: input, shape index: {}]
  %s5 = inlined_call_operand.vmem [shape: f32[1,64], index: 5, kind: input, shape index: {}]
  %s6 = inlined_call_operand.vmem [shape: bf16[64,256], index: 6, kind: input, shape index: {}]
  %s7 = inlined_call_operand.vmem [shape: f32[1,256], index: 7, kind: input, shape index: {}]
  %s8 = inlined_call_operand.vmem [shape: bf16[256,64], index: 8, kind: input, shape index: {}]
  %s9 = inlined_call_operand.vmem [shape: f32[1,64], index: 9, kind: input, shape index: {}]
  %s10 = inlined_call_operand.vmem [shape: f32[32,64], index: 10, kind: output, shape index: {}]
  %s11 = sld [smem:[#allocation0]]
  $region58: #{gpt_forward.9} parent=0
    _
  %s13 = ssub.s32 1, %s11
  %s14 = scalar_select 0, %s13, %s11
  // Predicated region
  $region2: #{gpt_forward.9} parent=0 // pred_check
    _
  $region3: #{gpt_forward.9} parent=0 // pred_check_branch
    %16 = sbr.rel (0) target = $region5
  $region4: #{gpt_forward.9} parent=0 // pred_region
    _
  $region5: #{gpt_forward.9} parent=0 // pred_fallthru
    _
  // Predicated region
  $region6: #{gpt_forward.9} parent=0 // pred_check
    _
  $region7: #{gpt_forward.9} parent=0 // pred_check_branch
    %18 = sbr.rel (0) target = $region9
  $region8: #{gpt_forward.9} parent=0 // pred_region
    _
  $region9: #{gpt_forward.9} parent=0 // pred_fallthru
    _
  // Predicated region
  $region10: #{gpt_forward.9} parent=0 // pred_check
    _
  $region11: #{gpt_forward.9} parent=0 // pred_check_branch
    %20 = sbr.rel (0) target = $region13
  $region12: #{gpt_forward.9} parent=0 // pred_region
    _
  $region13: #{gpt_forward.9} parent=0 // pred_fallthru
    _
  // Predicated region
  $region14: #{gpt_forward.9} parent=0 // pred_check
    _
  $region15: #{gpt_forward.9} parent=0 // pred_check_branch
    %22 = sbr.rel (0) target = $region17
  $region16: #{gpt_forward.9} parent=0 // pred_region
    _
  $region17: #{gpt_forward.9} parent=0 // pred_fallthru
    _
  // Predicated region
  $region18: #{gpt_forward.9} parent=0 // pred_check
    _
  $region19: #{gpt_forward.9} parent=0 // pred_check_branch
    %24 = sbr.rel (0) target = $region21
  $region20: #{gpt_forward.9} parent=0 // pred_region
    _
  $region21: #{gpt_forward.9} parent=0 // pred_fallthru
    _
  // Predicated region
  $region22: #{gpt_forward.9} parent=0 // pred_check
    _
  $region23: #{gpt_forward.9} parent=0 // pred_check_branch
    %26 = sbr.rel (0) target = $region25
  $region24: #{gpt_forward.9} parent=0 // pred_region
    _
  $region25: #{gpt_forward.9} parent=0 // pred_fallthru
    _
  // Predicated region
  $region26: #{gpt_forward.9} parent=0 // pred_check
    _
  $region27: #{gpt_forward.9} parent=0 // pred_check_branch
    %28 = sbr.rel (0) target = $region29
  $region28: #{gpt_forward.9} parent=0 // pred_region
    _
  $region29: #{gpt_forward.9} parent=0 // pred_fallthru
    _
  // Predicated region
  $region30: #{gpt_forward.9} parent=0 // pred_check
    _
  $region31: #{gpt_forward.9} parent=0 // pred_check_branch
    %30 = sbr.rel (0) target = $region33
  $region32: #{gpt_forward.9} parent=0 // pred_region
    _
  $region33: #{gpt_forward.9} parent=0 // pred_fallthru
    _
  // Predicated region
  $region34: #{gpt_forward.9} parent=0 // pred_check
    _
  $region35: #{gpt_forward.9} parent=0 // pred_check_branch
    %32 = sbr.rel (0) target = $region37
  $region36: #{gpt_forward.9} parent=0 // pred_region
    _
  $region37: #{gpt_forward.9} parent=0 // pred_fallthru
    _
  // Predicated region
  $region38: #{gpt_forward.9} parent=0 // pred_check
    _
  $region39: #{gpt_forward.9} parent=0 // pred_check_branch
    %34 = sbr.rel (0) target = $region41
  $region40: #{gpt_forward.9} parent=0 // pred_region
    _
  $region41: #{gpt_forward.9} parent=0 // pred_fallthru
    _
  %p36 = scmp.eq.s32.totalorder 0, 0
  // Predicated region
  $region42: #{gpt_forward.9} parent=0 // pred_check
    %p37 = pneg %p36
  $region43: #{gpt_forward.9} parent=0 // pred_check_branch
    %39 = sbr.rel (%p37) target = $region45
  $region44: #{gpt_forward.9} parent=0 // pred_region
    %v40 = vld [vmem:[%s3] sm:$0xff]
    %v41 = vld [vmem:[%s3 + $0x8] sm:$0xff]
    %v42 = vld [vmem:[%s3 + $0x10] sm:$0xff]
    %v43 = vld [vmem:[%s3 + $0x18] sm:$0xff]
    %v44 = vld [vmem:[%s0] sm:$0xf]
    %v45 = vld [vmem:[%s0 + $0x4] sm:$0xf]
    %v46 = vld [vmem:[%s0 + $0x8] sm:$0xf]
    %v47 = vld [vmem:[%s0 + $0xc] sm:$0xf]
    %v48 = vld [vmem:[%s1] sm:$0xf]
    %v49 = vld [vmem:[%s1 + $0x4] sm:$0xf]
    %v50 = vld [vmem:[%s1 + $0x8] sm:$0xf]
    %v51 = vld [vmem:[%s1 + $0xc] sm:$0xf]
    %v52 = vld [vmem:[%s1 + $0x10] sm:$0xf]
    %v53 = vld [vmem:[%s1 + $0x14] sm:$0xf]
    %v54 = vld [vmem:[%s1 + $0x18] sm:$0xf]
    %v55 = vld [vmem:[%s1 + $0x1c] sm:$0xf]
    %v60 = vunpack.c.l.b16 %v44
    %v61 = vunpack.c.l.b16 %v45
    %v62 = vunpack.c.l.b16 %v46
    %v63 = vunpack.c.l.b16 %v47
    %v64 = vpack.c.b16 %v61, %v60
    %v65 = vpack.c.b16 %v63, %v62
    %v74 = vunpack.c.l.b16 %v48
    %v75 = vunpack.c.l.b16 %v49
    %v76 = vunpack.c.l.b16 %v50
    %v77 = vunpack.c.l.b16 %v51
    %v78 = vunpack.c.l.b16 %v52
    %v79 = vunpack.c.l.b16 %v53
    %v80 = vunpack.c.l.b16 %v54
    %v81 = vunpack.c.l.b16 %v55
    %v82 = vpack.c.b16 %v75, %v74
    %v83 = vpack.c.b16 %v77, %v76
    %v84 = vpack.c.b16 %v79, %v78
    %v85 = vpack.c.b16 %v81, %v80
    %vm90 = vcmask 523264
    %v92 = vsel %vm90, %v64, 0
    %v95 = vsel %vm90, %v65, 0
    %97 = vmatprep.subr.bf16.mxu0 0
    %98 = vmatpush1.bf16.msra.mxu0 %v82
    %99 = vmatprep.subr.bf16.mxu0 0
    %100 = vmatpush1.bf16.msra.mxu0 %v83
    %101 = vmatprep.subr.bf16.mxu0 0
    %102 = vmatpush1.bf16.msra.mxu0 %v84
    %103 = vmatprep.subr.bf16.mxu0 0
    %104 = vmatpush1.bf16.msra.mxu0 %v85
    %105 = vmatprep.subr.bf16.mxu0 0
    %106 = vmatpush1.bf16.msra.mxu0 0
    %107 = vmatprep.subr.bf16.mxu0 0
    %108 = vmatpush1.bf16.msra.mxu0 0
    %109 = vmatprep.subr.bf16.mxu0 0
    %110 = vmatpush1.bf16.msra.mxu0 0
    %111 = vmatprep.subr.bf16.mxu0 0
    %112 = vmatpush1.bf16.msra.mxu0 0
    %113 = vmatprep.subr.bf16.mxu0 0
    %114 = vmatpush1.bf16.msra.mxu0 0
    %115 = vmatprep.subr.bf16.mxu0 0
    %116 = vmatpush1.bf16.msra.mxu0 0
    %117 = vmatprep.subr.bf16.mxu0 0
    %118 = vmatpush1.bf16.msra.mxu0 0
    %119 = vmatprep.subr.bf16.mxu0 0
    %120 = vmatpush1.bf16.msra.mxu0 0
    %121 = vmatprep.subr.bf16.mxu0 0
    %122 = vmatpush1.bf16.msra.mxu0 0
    %123 = vmatprep.subr.bf16.mxu0 0
    %124 = vmatpush1.bf16.msra.mxu0 0
    %125 = vmatprep.subr.bf16.mxu0 0
    %126 = vmatpush1.bf16.msra.mxu0 0
    %127 = vmatprep.subr.bf16.mxu0 0
    %128 = vmatpush1.bf16.msra.mxu0 0
    %129 = vmatprep.mubr.bf16.mxu0 0
    %130 = vmatmul.mubr.bf16.gmra.mrb[0].mxu0 %v92
    %v131 = vpop.f32.mrb[0].mxu0
    %v132 = vadd.f32 0.0, %v131
    %v133 = vpop.f32.mrb[0].mxu0
    %v134 = vpop.f32.mrb[0].mxu0
    %v135 = vadd.f32 0.0, %v134
    %v136 = vpop.f32.mrb[0].mxu0
    %137 = vmatprep.mubr.bf16.mxu0 0
    %138 = vmatmul.mubr.bf16.gmra.mrb[0].mxu0 %v95
    %v139 = vpop.f32.mrb[0].mxu0
    %v140 = vadd.f32 0.0, %v139
    %v141 = vpop.f32.mrb[0].mxu0
    %v142 = vpop.f32.mrb[0].mxu0
    %v143 = vadd.f32 0.0, %v142
    %v144 = vpop.f32.mrb[0].mxu0
    %145 = vdwg.mxu0
    %v146 = vadd.f32 %v40, %v132
    %v147 = vadd.f32 %v41, %v135
    %v148 = vadd.f32 %v42, %v140
    %v149 = vadd.f32 %v43, %v143
    %v150 = vld [vmem:[%s2] sm:$0x1]
    %v152 = vlaneseq
    %v153 = vshrl.u32 %v152, 7
    %v154 = vsub.s32 0, %v153
    %v155 = vrot.slane %v150, %v154
    %v157 = vadd.f32 %v146, %v155
    %v158 = vadd.f32 %v147, %v155
    %v159 = vadd.f32 %v148, %v155
    %v160 = vadd.f32 %v149, %v155
    %v161 = vsel %vm90, %v157, 0.0
    %162 = vadd.xlane.f32.xlu0 %v161
    %v163 = vpop.xlane.xlu0 %162
    %v164 = vsel %vm90, %v158, 0.0
    %165 = vadd.xlane.f32.xlu0 %v164
    %v166 = vpop.xlane.xlu0 %165
    %v167 = vsel %vm90, %v159, 0.0
    %168 = vadd.xlane.f32.xlu0 %v167
    %v169 = vpop.xlane.xlu0 %168
    %v170 = vsel %vm90, %v160, 0.0
    %171 = vadd.xlane.f32.xlu0 %v170
    %v172 = vpop.xlane.xlu0 %171
    %v173 = vrcp.pop 64.0
    %v174 = vmul.f32 %v163, %v173
    %v175 = vmul.f32 %v166, %v173
    %v176 = vmul.f32 %v169, %v173
    %v177 = vmul.f32 %v172, %v173
    %v178 = vsub.f32 %v157, %v174
    %v179 = vsub.f32 %v158, %v175
    %v180 = vsub.f32 %v159, %v176
    %v181 = vsub.f32 %v160, %v177
    %v182 = vmul.f32 %v178, %v178
    %v183 = vmul.f32 %v179, %v179
    %v184 = vmul.f32 %v180, %v180
    %v185 = vmul.f32 %v181, %v181
    %v186 = vsel %vm90, %v182, 0.0
    %187 = vadd.xlane.f32.xlu0 %v186
    %v188 = vpop.xlane.xlu0 %187
    %v189 = vsel %vm90, %v183, 0.0
    %190 = vadd.xlane.f32.xlu0 %v189
    %v191 = vpop.xlane.xlu0 %190
    %v192 = vsel %vm90, %v184, 0.0
    %193 = vadd.xlane.f32.xlu0 %v192
    %v194 = vpop.xlane.xlu0 %193
    %v195 = vsel %vm90, %v185, 0.0
    %196 = vadd.xlane.f32.xlu0 %v195
    %v197 = vpop.xlane.xlu0 %196
    %v198 = vmul.f32 %v188, %v173
    %v199 = vmul.f32 %v191, %v173
    %v200 = vmul.f32 %v194, %v173
    %v201 = vmul.f32 %v197, %v173
    %v202 = vadd.f32 %v198, 1e-05
    %v203 = vadd.f32 %v199, 1e-05
    %v204 = vadd.f32 %v200, 1e-05
    %v205 = vadd.f32 %v201, 1e-05
    %v206 = vrsqrt.pop %v202
    %v207 = vrsqrt.pop %v203
    %v208 = vrsqrt.pop %v204
    %v209 = vrsqrt.pop %v205
    %v210 = vmul.f32 %v178, %v206
    %v211 = vmul.f32 %v179, %v207
    %v212 = vmul.f32 %v180, %v208
    %v213 = vmul.f32 %v181, %v209
    %v214 = vld [vmem:[%s4] sm:$0x1]
    %v216 = vlaneseq
    %v217 = vshrl.u32 %v216, 7
    %v218 = vsub.s32 0, %v217
    %v219 = vrot.slane %v214, %v218
    %v221 = vmul.f32 %v210, %v219
    %v222 = vmul.f32 %v211, %v219
    %v223 = vmul.f32 %v212, %v219
    %v224 = vmul.f32 %v213, %v219
    %v225 = vld [vmem:[%s5] sm:$0x1]
    %v227 = vlaneseq
    %v228 = vshrl.u32 %v227, 7
    %v229 = vsub.s32 0, %v228
    %v230 = vrot.slane %v225, %v229
    %v232 = vadd.f32 %v221, %v230
    %v233 = vadd.f32 %v222, %v230
    %v234 = vadd.f32 %v223, %v230
    %v235 = vadd.f32 %v224, %v230
    %v236 = vpack.c.bf16 %v233, %v232
    %v237 = vpack.c.bf16 %v235, %v234
    %238 = vst.msk [vmem:[#allocation2] sm:$0xff] %vm90, %v236
    %239 = vst.msk [vmem:[#allocation2 + $0x8] sm:$0xff] %vm90, %v237
    %v240 = vld [vmem:[%s9] sm:$0x1]
    %v242 = vlaneseq
    %v243 = vshrl.u32 %v242, 7
    %v244 = vsub.s32 0, %v243
    %v245 = vrot.slane %v240, %v244
    %v247 = vadd.f32 %v157, %v245
    %v248 = vadd.f32 %v158, %v245
    %v249 = vadd.f32 %v159, %v245
    %v250 = vadd.f32 %v160, %v245
    %251 = vst.msk [vmem:[#allocation3] sm:$0xff] %vm90, %v247
    %252 = vst.msk [vmem:[#allocation3 + $0x8] sm:$0xff] %vm90, %v248
    %253 = vst.msk [vmem:[#allocation3 + $0x10] sm:$0xff] %vm90, %v249
    %254 = vst.msk [vmem:[#allocation3 + $0x18] sm:$0xff] %vm90, %v250
  $region45: #{gpt_forward.9} parent=0 // pred_fallthru
    _
  %v255 = vld [vmem:[#allocation2] sm:$0xff]
  %v256 = vld [vmem:[#allocation2 + $0x8] sm:$0xff]
  %v257 = vld [vmem:[%s6] sm:$0xff]
  %v258 = vld [vmem:[%s6 + $0x8] sm:$0xff]
  %v259 = vld [vmem:[%s6 + $0x10] sm:$0xff]
  %v260 = vld [vmem:[%s6 + $0x18] sm:$0xff]
  %v261 = vld [vmem:[%s6 + $0x20] sm:$0xff]
  %v262 = vld [vmem:[%s6 + $0x28] sm:$0xff]
  %v263 = vld [vmem:[%s6 + $0x30] sm:$0xff]
  %v264 = vld [vmem:[%s6 + $0x38] sm:$0xff]
  %v265 = vld [vmem:[%s7] sm:$0x3]
  %v267 = vlaneseq
  %v268 = vshrl.u32 %v267, 7
  %v269 = vsub.s32 0, %v268
  %v270 = vrot.slane %v265, %v269
  %v271 = vlaneseq
  %v272 = vshrl.u32 %v271, 7
  %v273 = vsub.s32 1, %v272
  %v274 = vrot.slane %v265, %v273
  %v285 = vunpack.c.l.b16 %v257
  %v286 = vunpack.c.h.b16 %v257
  %v287 = vunpack.c.l.b16 %v258
  %v288 = vunpack.c.h.b16 %v258
  %v289 = vunpack.c.l.b16 %v259
  %v290 = vunpack.c.h.b16 %v259
  %v291 = vunpack.c.l.b16 %v260
  %v292 = vunpack.c.h.b16 %v260
  %v293 = vunpack.c.l.b16 %v261
  %v294 = vunpack.c.h.b16 %v261
  %v295 = vunpack.c.l.b16 %v262
  %v296 = vunpack.c.h.b16 %v262
  %v297 = vunpack.c.l.b16 %v263
  %v298 = vunpack.c.h.b16 %v263
  %v299 = vunpack.c.l.b16 %v264
  %v300 = vunpack.c.h.b16 %v264
  %v301 = vpack.c.b16 %v287, %v285
  %v302 = vpack.c.b16 %v288, %v286
  %v303 = vpack.c.b16 %v291, %v289
  %v304 = vpack.c.b16 %v292, %v290
  %v305 = vpack.c.b16 %v295, %v293
  %v306 = vpack.c.b16 %v296, %v294
  %v307 = vpack.c.b16 %v299, %v297
  %v308 = vpack.c.b16 %v300, %v298
  %vm317 = vcmask 523264
  %v319 = vsel %vm317, %v255, 0
  %v322 = vsel %vm317, %v256, 0
  %324 = vmatprep.subr.bf16.mxu0 %v302
  %325 = vmatpush1.bf16.msra.mxu0 %v301
  %326 = vmatprep.subr.bf16.mxu0 %v304
  %327 = vmatpush1.bf16.msra.mxu0 %v303
  %328 = vmatprep.subr.bf16.mxu0 %v306
  %329 = vmatpush1.bf16.msra.mxu0 %v305
  %330 = vmatprep.subr.bf16.mxu0 %v308
  %331 = vmatpush1.bf16.msra.mxu0 %v307
  %332 = vmatprep.subr.bf16.mxu0 0
  %333 = vmatpush1.bf16.msra.mxu0 0
  %334 = vmatprep.subr.bf16.mxu0 0
  %335 = vmatpush1.bf16.msra.mxu0 0
  %336 = vmatprep.subr.bf16.mxu0 0
  %337 = vmatpush1.bf16.msra.mxu0 0
  %338 = vmatprep.subr.bf16.mxu0 0
  %339 = vmatpush1.bf16.msra.mxu0 0
  %340 = vmatprep.subr.bf16.mxu0 0
  %341 = vmatpush1.bf16.msra.mxu0 0
  %342 = vmatprep.subr.bf16.mxu0 0
  %343 = vmatpush1.bf16.msra.mxu0 0
  %344 = vmatprep.subr.bf16.mxu0 0
  %345 = vmatpush1.bf16.msra.mxu0 0
  %346 = vmatprep.subr.bf16.mxu0 0
  %347 = vmatpush1.bf16.msra.mxu0 0
  %348 = vmatprep.subr.bf16.mxu0 0
  %349 = vmatpush1.bf16.msra.mxu0 0
  %350 = vmatprep.subr.bf16.mxu0 0
  %351 = vmatpush1.bf16.msra.mxu0 0
  %352 = vmatprep.subr.bf16.mxu0 0
  %353 = vmatpush1.bf16.msra.mxu0 0
  %354 = vmatprep.subr.bf16.mxu0 0
  %355 = vmatpush1.bf16.msra.mxu0 0
  %356 = vmatprep.mubr.bf16.mxu0 0
  %357 = vmatmul.mubr.bf16.gmra.mrb[0].mxu0 %v319
  %v358 = vpop.f32.mrb[0].mxu0
  %v359 = vadd.f32 %v270, %v358
  %v360 = vpop.f32.mrb[0].mxu0
  %v361 = vadd.f32 %v274, %v360
  %v362 = vpop.f32.mrb[0].mxu0
  %v363 = vadd.f32 %v270, %v362
  %v364 = vpop.f32.mrb[0].mxu0
  %v365 = vadd.f32 %v274, %v364
  %366 = vmatprep.mubr.bf16.mxu0 0
  %367 = vmatmul.mubr.bf16.gmra.mrb[0].mxu0 %v322
  %v368 = vpop.f32.mrb[0].mxu0
  %v369 = vadd.f32 %v270, %v368
  %v370 = vpop.f32.mrb[0].mxu0
  %v371 = vadd.f32 %v274, %v370
  %v372 = vpop.f32.mrb[0].mxu0
  %v373 = vadd.f32 %v270, %v372
  %v374 = vpop.f32.mrb[0].mxu0
  %v375 = vadd.f32 %v274, %v374
  %376 = vdwg.mxu0
  %v377 = vmul.f32 %v359, 0.5
  %v378 = vmul.f32 %v361, 0.5
  %v379 = vmul.f32 %v363, 0.5
  %v380 = vmul.f32 %v365, 0.5
  %v381 = vmul.f32 %v369, 0.5
  %v382 = vmul.f32 %v371, 0.5
  %v383 = vmul.f32 %v373, 0.5
  %v384 = vmul.f32 %v375, 0.5
  %v385 = vmul.f32 %v359, 0.70710677
  %v386 = vmul.f32 %v361, 0.70710677
  %v387 = vmul.f32 %v363, 0.70710677
  %v388 = vmul.f32 %v365, 0.70710677
  %v389 = vmul.f32 %v369, 0.70710677
  %v390 = vmul.f32 %v371, 0.70710677
  %v391 = vmul.f32 %v373, 0.70710677
  %v392 = vmul.f32 %v375, 0.70710677
  %v393 = verf.f32.pop %v385
  %v394 = verf.f32.pop %v386
  %v395 = verf.f32.pop %v387
  %v396 = verf.f32.pop %v388
  %v397 = verf.f32.pop %v389
  %v398 = verf.f32.pop %v390
  %v399 = verf.f32.pop %v391
  %v400 = verf.f32.pop %v392
  %v401 = vadd.f32 %v393, 1.0
  %v402 = vadd.f32 %v394, 1.0
  %v403 = vadd.f32 %v395, 1.0
  %v404 = vadd.f32 %v396, 1.0
  %v405 = vadd.f32 %v397, 1.0
  %v406 = vadd.f32 %v398, 1.0
  %v407 = vadd.f32 %v399, 1.0
  %v408 = vadd.f32 %v400, 1.0
  %v409 = vmul.f32 %v377, %v401
  %v410 = vmul.f32 %v378, %v402
  %v411 = vmul.f32 %v379, %v403
  %v412 = vmul.f32 %v380, %v404
  %v413 = vmul.f32 %v381, %v405
  %v414 = vmul.f32 %v382, %v406
  %v415 = vmul.f32 %v383, %v407
  %v416 = vmul.f32 %v384, %v408
  %v417 = vld [vmem:[#allocation3] sm:$0xff]
  %v418 = vld [vmem:[#allocation3 + $0x8] sm:$0xff]
  %v419 = vld [vmem:[#allocation3 + $0x10] sm:$0xff]
  %v420 = vld [vmem:[#allocation3 + $0x18] sm:$0xff]
  %v421 = vpack.c.bf16 %v411, %v409
  %v422 = vpack.c.bf16 %v412, %v410
  %v423 = vpack.c.bf16 %v415, %v413
  %v424 = vpack.c.bf16 %v416, %v414
  %v425 = vld [vmem:[%s8] sm:$0xf]
  %v426 = vld [vmem:[%s8 + $0x4] sm:$0xf]
  %v427 = vld [vmem:[%s8 + $0x8] sm:$0xf]
  %v428 = vld [vmem:[%s8 + $0xc] sm:$0xf]
  %v429 = vld [vmem:[%s8 + $0x10] sm:$0xf]
  %v430 = vld [vmem:[%s8 + $0x14] sm:$0xf]
  %v431 = vld [vmem:[%s8 + $0x18] sm:$0xf]
  %v432 = vld [vmem:[%s8 + $0x1c] sm:$0xf]
  %v433 = vld [vmem:[%s8 + $0x20] sm:$0xf]
  %v434 = vld [vmem:[%s8 + $0x24] sm:$0xf]
  %v435 = vld [vmem:[%s8 + $0x28] sm:$0xf]
  %v436 = vld [vmem:[%s8 + $0x2c] sm:$0xf]
  %v437 = vld [vmem:[%s8 + $0x30] sm:$0xf]
  %v438 = vld [vmem:[%s8 + $0x34] sm:$0xf]
  %v439 = vld [vmem:[%s8 + $0x38] sm:$0xf]
  %v440 = vld [vmem:[%s8 + $0x3c] sm:$0xf]
  %v441 = vld [vmem:[%s8 + $0x40] sm:$0xf]
  %v442 = vld [vmem:[%s8 + $0x44] sm:$0xf]
  %v443 = vld [vmem:[%s8 + $0x48] sm:$0xf]
  %v444 = vld [vmem:[%s8 + $0x4c] sm:$0xf]
  %v445 = vld [vmem:[%s8 + $0x50] sm:$0xf]
  %v446 = vld [vmem:[%s8 + $0x54] sm:$0xf]
  %v447 = vld [vmem:[%s8 + $0x58] sm:$0xf]
  %v448 = vld [vmem:[%s8 + $0x5c] sm:$0xf]
  %v449 = vld [vmem:[%s8 + $0x60] sm:$0xf]
  %v450 = vld [vmem:[%s8 + $0x64] sm:$0xf]
  %v451 = vld [vmem:[%s8 + $0x68] sm:$0xf]
  %v452 = vld [vmem:[%s8 + $0x6c] sm:$0xf]
  %v453 = vld [vmem:[%s8 + $0x70] sm:$0xf]
  %v454 = vld [vmem:[%s8 + $0x74] sm:$0xf]
  %v455 = vld [vmem:[%s8 + $0x78] sm:$0xf]
  %v456 = vld [vmem:[%s8 + $0x7c] sm:$0xf]
  %v489 = vunpack.c.l.b16 %v425
  %v490 = vunpack.c.l.b16 %v426
  %v491 = vunpack.c.l.b16 %v427
  %v492 = vunpack.c.l.b16 %v428
  %v493 = vunpack.c.l.b16 %v429
  %v494 = vunpack.c.l.b16 %v430
  %v495 = vunpack.c.l.b16 %v431
  %v496 = vunpack.c.l.b16 %v432
  %v497 = vunpack.c.l.b16 %v433
  %v498 = vunpack.c.l.b16 %v434
  %v499 = vunpack.c.l.b16 %v435
  %v500 = vunpack.c.l.b16 %v436
  %v501 = vunpack.c.l.b16 %v437
  %v502 = vunpack.c.l.b16 %v438
  %v503 = vunpack.c.l.b16 %v439
  %v504 = vunpack.c.l.b16 %v440
  %v505 = vunpack.c.l.b16 %v441
  %v506 = vunpack.c.l.b16 %v442
  %v507 = vunpack.c.l.b16 %v443
  %v508 = vunpack.c.l.b16 %v444
  %v509 = vunpack.c.l.b16 %v445
  %v510 = vunpack.c.l.b16 %v446
  %v511 = vunpack.c.l.b16 %v447
  %v512 = vunpack.c.l.b16 %v448
  %v513 = vunpack.c.l.b16 %v449
  %v514 = vunpack.c.l.b16 %v450
  %v515 = vunpack.c.l.b16 %v451
  %v516 = vunpack.c.l.b16 %v452
  %v517 = vunpack.c.l.b16 %v453
  %v518 = vunpack.c.l.b16 %v454
  %v519 = vunpack.c.l.b16 %v455
  %v520 = vunpack.c.l.b16 %v456
  %v521 = vpack.c.b16 %v490, %v489
  %v522 = vpack.c.b16 %v492, %v491
  %v523 = vpack.c.b16 %v494, %v493
  %v524 = vpack.c.b16 %v496, %v495
  %v525 = vpack.c.b16 %v498, %v497
  %v526 = vpack.c.b16 %v500, %v499
  %v527 = vpack.c.b16 %v502, %v501
  %v528 = vpack.c.b16 %v504, %v503
  %v529 = vpack.c.b16 %v506, %v505
  %v530 = vpack.c.b16 %v508, %v507
  %v531 = vpack.c.b16 %v510, %v509
  %v532 = vpack.c.b16 %v512, %v511
  %v533 = vpack.c.b16 %v514, %v513
  %v534 = vpack.c.b16 %v516, %v515
  %v535 = vpack.c.b16 %v518, %v517
  %v536 = vpack.c.b16 %v520, %v519
  %553 = vmatprep.subr.bf16.mxu0 0
  %554 = vmatpush1.bf16.msra.mxu0 %v521
  %555 = vmatprep.subr.bf16.mxu0 0
  %556 = vmatpush1.bf16.msra.mxu0 %v522
  %557 = vmatprep.subr.bf16.mxu0 0
  %558 = vmatpush1.bf16.msra.mxu0 %v523
  %559 = vmatprep.subr.bf16.mxu0 0
  %560 = vmatpush1.bf16.msra.mxu0 %v524
  %561 = vmatprep.subr.bf16.mxu0 0
  %562 = vmatpush1.bf16.msra.mxu0 %v525
  %563 = vmatprep.subr.bf16.mxu0 0
  %564 = vmatpush1.bf16.msra.mxu0 %v526
  %565 = vmatprep.subr.bf16.mxu0 0
  %566 = vmatpush1.bf16.msra.mxu0 %v527
  %567 = vmatprep.subr.bf16.mxu0 0
  %568 = vmatpush1.bf16.msra.mxu0 %v528
  %569 = vmatprep.subr.bf16.mxu0 0
  %570 = vmatpush1.bf16.msra.mxu0 %v529
  %571 = vmatprep.subr.bf16.mxu0 0
  %572 = vmatpush1.bf16.msra.mxu0 %v530
  %573 = vmatprep.subr.bf16.mxu0 0
  %574 = vmatpush1.bf16.msra.mxu0 %v531
  %575 = vmatprep.subr.bf16.mxu0 0
  %576 = vmatpush1.bf16.msra.mxu0 %v532
  %577 = vmatprep.subr.bf16.mxu0 0
  %578 = vmatpush1.bf16.msra.mxu0 %v533
  %579 = vmatprep.subr.bf16.mxu0 0
  %580 = vmatpush1.bf16.msra.mxu0 %v534
  %581 = vmatprep.subr.bf16.mxu0 0
  %582 = vmatpush1.bf16.msra.mxu0 %v535
  %583 = vmatprep.subr.bf16.mxu0 0
  %584 = vmatpush1.bf16.msra.mxu0 %v536
  %585 = vmatprep.mubr.bf16.mxu0 %v422
  %586 = vmatmul.mubr.bf16.gmra.mrb[0].mxu0 %v421
  %v587 = vpop.f32.mrb[0].mxu0
  %v588 = vadd.f32 0.0, %v587
  %v589 = vpop.f32.mrb[0].mxu0
  %v590 = vpop.f32.mrb[0].mxu0
  %v591 = vadd.f32 0.0, %v590
  %v592 = vpop.f32.mrb[0].mxu0
  %593 = vmatprep.mubr.bf16.mxu0 %v424
  %594 = vmatmul.mubr.bf16.gmra.mrb[0].mxu0 %v423
  %v595 = vpop.f32.mrb[0].mxu0
  %v596 = vadd.f32 0.0, %v595
  %v597 = vpop.f32.mrb[0].mxu0
  %v598 = vpop.f32.mrb[0].mxu0
  %v599 = vadd.f32 0.0, %v598
  %v600 = vpop.f32.mrb[0].mxu0
  %601 = vdwg.mxu0
  %v602 = vadd.f32 %v417, %v588
  %v603 = vadd.f32 %v418, %v591
  %v604 = vadd.f32 %v419, %v596
  %v605 = vadd.f32 %v420, %v599
  %606 = vst.msk [vmem:[#allocation3] sm:$0xff] %vm317, %v602
  %607 = vst.msk [vmem:[#allocation3 + $0x8] sm:$0xff] %vm317, %v603
  %608 = vst.msk [vmem:[#allocation3 + $0x10] sm:$0xff] %vm317, %v604
  %609 = vst.msk [vmem:[#allocation3 + $0x18] sm:$0xff] %vm317, %v605
  // Predicated region
  $region46: #{gpt_forward.9} parent=0 // pred_check
    %p610 = pneg %p36
  $region47: #{gpt_forward.9} parent=0 // pred_check_branch
    %612 = sbr.rel (%p610) target = $region49
  $region48: #{gpt_forward.9} parent=0 // pred_region
    %v613 = vld [vmem:[#allocation3] sm:$0xff]
    %v614 = vld [vmem:[#allocation3 + $0x8] sm:$0xff]
    %v615 = vld [vmem:[#allocation3 + $0x10] sm:$0xff]
    %v616 = vld [vmem:[#allocation3 + $0x18] sm:$0xff]
    %617 = vst.msk [vmem:[%s10] sm:$0xff] %vm317, %v613
    %618 = vst.msk [vmem:[%s10 + $0x8] sm:$0xff] %vm317, %v614
    %619 = vst.msk [vmem:[%s10 + $0x10] sm:$0xff] %vm317, %v615
    %620 = vst.msk [vmem:[%s10 + $0x18] sm:$0xff] %vm317, %v616
  $region49: #{gpt_forward.9} parent=0 // pred_fallthru
    _
  // Predicated region
  $region50: #{gpt_forward.9} parent=0 // pred_check
    _
  $region51: #{gpt_forward.9} parent=0 // pred_check_branch
    %622 = sbr.rel (0) target = $region53
  $region52: #{gpt_forward.9} parent=0 // pred_region
    _
  $region53: #{gpt_forward.9} parent=0 // pred_fallthru
    _
  // Predicated region
  $region54: #{gpt_forward.9} parent=0 // pred_check
    _
  $region55: #{gpt_forward.9} parent=0 // pred_check_branch
    %624 = sbr.rel (0) target = $region57
  $region56: #{gpt_forward.9} parent=0 // pred_region
    _
  $region57: #{gpt_forward.9} parent=0 // pred_fallthru
    _

</llo_original>
